<compile_context>
chip_gen: v6e
topology: v6e:2x2x1
jax: 0.10.0
libtpu: 0.0.40
codegen_flags: <defaults>
</compile_context>

<pallas_src>
import functools

import jax
import jax.numpy as jnp
from jax.experimental import pallas as pl
from jax.experimental.pallas import tpu as pltpu


def _textcnn_kernel(seq_len, batch_tile,
                    toku_ref, emb_ref, wf_ref, bf_ref, mask_ref,
                    fcw_ref, fcb_ref, out_ref):
    k_max, _, f_tot = wf_ref.shape          # fused conv weight: (k_max, E, 3F)
    vocab, _ = emb_ref.shape
    tbl = batch_tile * seq_len              # rows per batch tile

    # ---- Embedding lookup: ONE one-hot + ONE MXU matmul for all taps x sequences.
    # TODO(synk): for realistic vocabularies (V >~ 128) replace the one-hot matmul
    # with a gather and keep the table in HBM (memory_space=pl.ANY) with a per-tile
    # DMA gather; the VMEM-resident table + one-hot path only makes sense for tiny V.
    tok_col = toku_ref[...]                                           # (k_max*tbl, 1) int32
    iota_v = jax.lax.broadcasted_iota(jnp.int32, (k_max * tbl, vocab), 1)
    onehot = (iota_v == tok_col).astype(jnp.float32)                  # (k_max*tbl, V)
    emb_all = jnp.dot(onehot, emb_ref[...],
                      preferred_element_type=jnp.float32)             # (k_max*tbl, E)

    # ---- Fused conv: per tap, one (tbl, E) @ (E, 3F) matmul; slices are 128-aligned.
    wf = wf_ref[...]                                                  # (k_max, E, 3F)
    acc = jnp.dot(emb_all[0:tbl, :], wf[0], preferred_element_type=jnp.float32)
    for s in range(1, k_max):
        acc = acc + jnp.dot(emb_all[s * tbl:(s + 1) * tbl, :], wf[s],
                            preferred_element_type=jnp.float32)       # (tbl, 3F)

    # Bias + ReLU; zero the wrapped / out-of-range window positions.  ReLU >= 0,
    # so masking with 0 is exact w.r.t. the following max-pool.
    relu = jnp.maximum(acc + bf_ref[...], 0.0) * mask_ref[...]        # (tbl, 3F)

    # ---- Max-pool over time, batched over the whole tile.
    feat = jnp.max(relu.reshape(batch_tile, seq_len, f_tot), axis=1)  # (TB, 3F)

    # TODO(synk): nn.Dropout is identity in eval mode; no RNG dropout implemented.
    # ---- Final linear; single lane-dense store (class dim pre-padded to 128 lanes).
    out_ref[...] = (jnp.dot(feat, fcw_ref[...], preferred_element_type=jnp.float32)
                    + fcb_ref[...])


def textcnn_forward(tokens, emb_table, conv_weights, conv_biases,
                    fc_weight, fc_bias, filter_sizes, *, batch_tile=None):
    """TextCNN forward (eval mode, single embedding channel).

    tokens:       (B, L) int32 token ids in [0, V)
    emb_table:    (V, E) float32
    conv_weights: list of PyTorch-layout Conv2d weights, each (F, 1, k_i, E)
    conv_biases:  list of (F,) float32
    fc_weight:    PyTorch-layout Linear weight, (C, len(filter_sizes)*F)
    fc_bias:      (C,) float32
    """
    B, L = tokens.shape
    V, E = emb_table.shape
    F = conv_weights[0].shape[0]
    n_sizes = len(filter_sizes)
    f_tot = n_sizes * F
    C = fc_weight.shape[0]
    k_max = max(filter_sizes)

    if batch_tile is None:
        batch_tile = B
    assert B % batch_tile == 0
    # Output block second-minor dim must be a multiple of 8 or the full batch.
    assert batch_tile == B or batch_tile % 8 == 0
    G = B // batch_tile
    tbl = batch_tile * L

    # ---- Tap-unfolded token ids (pure index plumbing, done outside the kernel).
    # Row (within tile g):  s*(TB*L) + bb*L + t   ->   tokens[g*TB + bb, (t+s) % L]
    rolled = jnp.stack([jnp.roll(tokens, -s, axis=1) for s in range(k_max)], axis=0)
    tok_unfold = jnp.transpose(rolled.reshape(k_max, G, batch_tile, L),
                               (1, 0, 2, 3)).reshape(G, k_max * tbl, 1).astype(jnp.int32)

    # ---- Fused conv weights: zero-pad each filter to k_max taps, concat along F.
    wf = jnp.zeros((k_max, E, f_tot), jnp.float32)
    bf = jnp.zeros((1, f_tot), jnp.float32)
    for i, (k, w, b) in enumerate(zip(filter_sizes, conv_weights, conv_biases)):
        w_t = jnp.transpose(w[:, 0, :, :].astype(jnp.float32), (1, 2, 0))   # (k, E, F)
        wf = wf.at[:k, :, i * F:(i + 1) * F].set(w_t)
        bf = bf.at[0, i * F:(i + 1) * F].set(b.astype(jnp.float32))

    # ---- Static validity mask for one tile: window start t valid iff t <= L - k.
    t_local = jnp.arange(tbl, dtype=jnp.int32) % L
    mask_cols = []
    for k in filter_sizes:
        valid = (t_local <= (L - k)).astype(jnp.float32)[:, None]           # (tbl, 1)
        mask_cols.append(jnp.broadcast_to(valid, (tbl, F)))
    pool_mask = jnp.concatenate(mask_cols, axis=1)                          # (tbl, 3F)

    # ---- FC weights: transpose to (3F, C), zero-pad classes to lane-dense 128.
    c_pad = ((C + 127) // 128) * 128
    fcw = jnp.zeros((f_tot, c_pad), jnp.float32).at[:, :C].set(
        fc_weight.T.astype(jnp.float32))
    fcb = jnp.zeros((1, c_pad), jnp.float32).at[0, :C].set(fc_bias.astype(jnp.float32))

    kernel = functools.partial(_textcnn_kernel, L, batch_tile)
    out_padded = pl.pallas_call(
        kernel,
        out_shape=jax.ShapeDtypeStruct((B, c_pad), jnp.float32),
        grid=(G,),
        in_specs=[
            # per-tile tap-unfolded token ids (leading tile dim squeezed away)
            pl.BlockSpec((None, k_max * tbl, 1), lambda i: (i, 0, 0)),
            # grid-invariant parameters: stay resident in VMEM across batch tiles
            pl.BlockSpec((V, E), lambda i: (0, 0)),
            pl.BlockSpec((k_max, E, f_tot), lambda i: (0, 0, 0)),
            pl.BlockSpec((1, f_tot), lambda i: (0, 0)),
            pl.BlockSpec((tbl, f_tot), lambda i: (0, 0)),
            pl.BlockSpec((f_tot, c_pad), lambda i: (0, 0)),
            pl.BlockSpec((1, c_pad), lambda i: (0, 0)),
        ],
        out_specs=pl.BlockSpec((batch_tile, c_pad), lambda i: (i, 0)),
        compiler_params=pltpu.CompilerParams(
            dimension_semantics=("parallel",)),     # use both TensorCores on v7x
    )(tok_unfold, emb_table, wf, bf, pool_mask, fcw, fcb)

    return out_padded[:, :C]


def _textcnn_reference(tokens, emb_table, conv_weights, conv_biases,
                       fc_weight, fc_bias, filter_sizes):
    """Pure-JAX re-statement of the PyTorch forward (eval mode)."""
    L = tokens.shape[1]
    emb = emb_table[tokens]                                   # (B, L, E)
    pooled = []
    for (w, b), k in zip(zip(conv_weights, conv_biases), filter_sizes):
        w_t = jnp.transpose(w[:, 0, :, :], (1, 2, 0))         # (k, E, F)
        l_out = L - k + 1
        acc = sum(jnp.einsum('ble,ef->blf', emb[:, s:s + l_out, :], w_t[s])
                  for s in range(k))
        acc = jax.nn.relu(acc + b[None, None, :])
        pooled.append(jnp.max(acc, axis=1))                   # (B, F)
    feat = jnp.concatenate(pooled, axis=1)                    # (B, 3F)
    return feat @ fc_weight.T + fc_bias[None, :]


if __name__ == "__main__":
    # Small, deterministic configuration mirroring the PyTorch module's args.
    B, L = 16, 16                 # batch, sequence length
    V, E = 20, 32                 # vocabulary_size, embedding_dim
    FILTER_NUM = 8                # filter_num
    FILTER_SIZES = (3, 4, 5)      # filter_sizes
    CLASS_NUM = 4                 # class_num
    BATCH_TILE = 8                # sequences per grid step -> grid=(2,), parallel

    key = jax.random.PRNGKey(0)
    keys = jax.random.split(key, 4 + 2 * len(FILTER_SIZES))
    k_tok, k_emb, k_fcw, k_fcb = keys[0], keys[1], keys[2], keys[3]
    k_convs = keys[4:]

    tokens = jax.random.randint(k_tok, (B, L), 0, V, dtype=jnp.int32)
    emb_table = 0.1 * jax.random.normal(k_emb, (V, E), dtype=jnp.float32)

    conv_weights, conv_biases = [], []
    for i, ks in enumerate(FILTER_SIZES):
        w = 0.1 * jax.random.normal(k_convs[2 * i], (FILTER_NUM, 1, ks, E),
                                    dtype=jnp.float32)        # PyTorch Conv2d layout
        b = 0.01 * jax.random.normal(k_convs[2 * i + 1], (FILTER_NUM,),
                                     dtype=jnp.float32)
        conv_weights.append(w)
        conv_biases.append(b)

    fc_in = len(FILTER_SIZES) * FILTER_NUM
    fc_weight = 0.1 * jax.random.normal(k_fcw, (CLASS_NUM, fc_in), dtype=jnp.float32)
    fc_bias = 0.01 * jax.random.normal(k_fcb, (CLASS_NUM,), dtype=jnp.float32)

    logits = textcnn_forward(tokens, emb_table, conv_weights, conv_biases,
                             fc_weight, fc_bias, FILTER_SIZES,
                             batch_tile=BATCH_TILE)
    logits = jax.block_until_ready(logits)
    assert logits.shape == (B, CLASS_NUM) and logits.dtype == jnp.float32

    ref = _textcnn_reference(tokens, emb_table, conv_weights, conv_biases,
                             fc_weight, fc_bias, FILTER_SIZES)
    assert float(jnp.max(jnp.abs(logits - ref))) < 2e-2

    print("KERNEL_OK")
</pallas_src>

<mosaic_0001>
module attributes {stable_mosaic.version = 11 : i64} {
  func.func @_textcnn_kernel(%arg0: i32, %arg1: memref<1x640x1xi32, #tpu.memory_space<vmem>>, %arg2: memref<20x32xf32, #tpu.memory_space<vmem>>, %arg3: memref<5x32x24xf32, #tpu.memory_space<vmem>>, %arg4: memref<1x24xf32, #tpu.memory_space<vmem>>, %arg5: memref<128x24xf32, #tpu.memory_space<vmem>>, %arg6: memref<24x128xf32, #tpu.memory_space<vmem>>, %arg7: memref<1x128xf32, #tpu.memory_space<vmem>>, %arg8: memref<8x128xf32, #tpu.memory_space<vmem>>) attributes {dimension_semantics = [#tpu.dimension_semantics<parallel>], iteration_bounds = array<i64: 2>, scalar_prefetch = 0 : i64, scratch_operands = 0 : i64, tpu.core_type = #tpu.core_type<tc>, window_params = [{transform_indices = @transform_0, window_bounds = array<i64: 1, 640, 1>}, {pipeline_mode = #tpu.pipeline_mode<synchronous>, transform_indices = @transform_1, window_bounds = array<i64: 20, 32>}, {pipeline_mode = #tpu.pipeline_mode<synchronous>, transform_indices = @transform_2, window_bounds = array<i64: 5, 32, 24>}, {pipeline_mode = #tpu.pipeline_mode<synchronous>, transform_indices = @transform_3, window_bounds = array<i64: 1, 24>}, {pipeline_mode = #tpu.pipeline_mode<synchronous>, transform_indices = @transform_4, window_bounds = array<i64: 128, 24>}, {pipeline_mode = #tpu.pipeline_mode<synchronous>, transform_indices = @transform_5, window_bounds = array<i64: 24, 128>}, {pipeline_mode = #tpu.pipeline_mode<synchronous>, transform_indices = @transform_6, window_bounds = array<i64: 1, 128>}, {transform_indices = @transform_7, window_bounds = array<i64: 8, 128>}]} {
    %c0 = arith.constant 0 : index
    %c0_0 = arith.constant 0 : index
    %c0_1 = arith.constant 0 : index
    %0 = vector.load %arg1[%c0, %c0_0, %c0_1] : memref<1x640x1xi32, #tpu.memory_space<vmem>>, vector<1x640x1xi32>
    %1 = vector.shape_cast %0 : vector<1x640x1xi32> to vector<640x1xi32>
    %2 = tpu.iota {dimensions = array<i32: 1>} : vector<640x20xi32>
    %3 = vector.broadcast %1 : vector<640x1xi32> to vector<640x20xi32>
    %4 = arith.cmpi eq, %2, %3 : vector<640x20xi32>
    %5 = arith.extui %4 : vector<640x20xi1> to vector<640x20xi32>
    %6 = arith.sitofp %5 : vector<640x20xi32> to vector<640x20xf32>
    %c0_2 = arith.constant 0 : index
    %c0_3 = arith.constant 0 : index
    %7 = vector.load %arg2[%c0_2, %c0_3] : memref<20x32xf32, #tpu.memory_space<vmem>>, vector<20x32xf32>
    %cst = arith.constant dense<0.000000e+00> : vector<640x32xf32>
    %8 = tpu.matmul %6, %7, %cst {dimension_numbers = #tpu.dot_dimension_numbers<[1], [0], [0], [1], [0, 0, 1, 1], [], []>} : vector<640x20xf32>, vector<20x32xf32>, vector<640x32xf32> -> vector<640x32xf32>
    %c0_4 = arith.constant 0 : index
    %c0_5 = arith.constant 0 : index
    %c0_6 = arith.constant 0 : index
    %9 = vector.load %arg3[%c0_4, %c0_5, %c0_6] : memref<5x32x24xf32, #tpu.memory_space<vmem>>, vector<5x32x24xf32>
    %10 = vector.extract_strided_slice %8 {offsets = [0, 0], sizes = [128, 32], strides = [1, 1]} : vector<640x32xf32> to vector<128x32xf32>
    %11 = vector.extract_strided_slice %9 {offsets = [0, 0, 0], sizes = [1, 32, 24], strides = [1, 1, 1]} : vector<5x32x24xf32> to vector<1x32x24xf32>
    %12 = vector.shape_cast %11 : vector<1x32x24xf32> to vector<32x24xf32>
    %cst_7 = arith.constant dense<0.000000e+00> : vector<128x24xf32>
    %13 = tpu.matmul %10, %12, %cst_7 {dimension_numbers = #tpu.dot_dimension_numbers<[1], [0], [0], [1], [0, 0, 1, 1], [], []>} : vector<128x32xf32>, vector<32x24xf32>, vector<128x24xf32> -> vector<128x24xf32>
    %14 = vector.extract_strided_slice %8 {offsets = [128, 0], sizes = [128, 32], strides = [1, 1]} : vector<640x32xf32> to vector<128x32xf32>
    %15 = vector.extract_strided_slice %9 {offsets = [1, 0, 0], sizes = [1, 32, 24], strides = [1, 1, 1]} : vector<5x32x24xf32> to vector<1x32x24xf32>
    %16 = vector.shape_cast %15 : vector<1x32x24xf32> to vector<32x24xf32>
    %cst_8 = arith.constant dense<0.000000e+00> : vector<128x24xf32>
    %17 = tpu.matmul %14, %16, %cst_8 {dimension_numbers = #tpu.dot_dimension_numbers<[1], [0], [0], [1], [0, 0, 1, 1], [], []>} : vector<128x32xf32>, vector<32x24xf32>, vector<128x24xf32> -> vector<128x24xf32>
    %18 = arith.addf %13, %17 : vector<128x24xf32>
    %19 = vector.extract_strided_slice %8 {offsets = [256, 0], sizes = [128, 32], strides = [1, 1]} : vector<640x32xf32> to vector<128x32xf32>
    %20 = vector.extract_strided_slice %9 {offsets = [2, 0, 0], sizes = [1, 32, 24], strides = [1, 1, 1]} : vector<5x32x24xf32> to vector<1x32x24xf32>
    %21 = vector.shape_cast %20 : vector<1x32x24xf32> to vector<32x24xf32>
    %cst_9 = arith.constant dense<0.000000e+00> : vector<128x24xf32>
    %22 = tpu.matmul %19, %21, %cst_9 {dimension_numbers = #tpu.dot_dimension_numbers<[1], [0], [0], [1], [0, 0, 1, 1], [], []>} : vector<128x32xf32>, vector<32x24xf32>, vector<128x24xf32> -> vector<128x24xf32>
    %23 = arith.addf %18, %22 : vector<128x24xf32>
    %24 = vector.extract_strided_slice %8 {offsets = [384, 0], sizes = [128, 32], strides = [1, 1]} : vector<640x32xf32> to vector<128x32xf32>
    %25 = vector.extract_strided_slice %9 {offsets = [3, 0, 0], sizes = [1, 32, 24], strides = [1, 1, 1]} : vector<5x32x24xf32> to vector<1x32x24xf32>
    %26 = vector.shape_cast %25 : vector<1x32x24xf32> to vector<32x24xf32>
    %cst_10 = arith.constant dense<0.000000e+00> : vector<128x24xf32>
    %27 = tpu.matmul %24, %26, %cst_10 {dimension_numbers = #tpu.dot_dimension_numbers<[1], [0], [0], [1], [0, 0, 1, 1], [], []>} : vector<128x32xf32>, vector<32x24xf32>, vector<128x24xf32> -> vector<128x24xf32>
    %28 = arith.addf %23, %27 : vector<128x24xf32>
    %29 = vector.extract_strided_slice %8 {offsets = [512, 0], sizes = [128, 32], strides = [1, 1]} : vector<640x32xf32> to vector<128x32xf32>
    %30 = vector.extract_strided_slice %9 {offsets = [4, 0, 0], sizes = [1, 32, 24], strides = [1, 1, 1]} : vector<5x32x24xf32> to vector<1x32x24xf32>
    %31 = vector.shape_cast %30 : vector<1x32x24xf32> to vector<32x24xf32>
    %cst_11 = arith.constant dense<0.000000e+00> : vector<128x24xf32>
    %32 = tpu.matmul %29, %31, %cst_11 {dimension_numbers = #tpu.dot_dimension_numbers<[1], [0], [0], [1], [0, 0, 1, 1], [], []>} : vector<128x32xf32>, vector<32x24xf32>, vector<128x24xf32> -> vector<128x24xf32>
    %33 = arith.addf %28, %32 : vector<128x24xf32>
    %c0_12 = arith.constant 0 : index
    %c0_13 = arith.constant 0 : index
    %34 = vector.load %arg4[%c0_12, %c0_13] : memref<1x24xf32, #tpu.memory_space<vmem>>, vector<1x24xf32>
    %35 = vector.broadcast %34 : vector<1x24xf32> to vector<128x24xf32>
    %36 = arith.addf %33, %35 : vector<128x24xf32>
    %cst_14 = arith.constant 0.000000e+00 : f32
    %37 = vector.broadcast %cst_14 : f32 to vector<128x24xf32>
    %38 = arith.maximumf %36, %37 : vector<128x24xf32>
    %c0_15 = arith.constant 0 : index
    %c0_16 = arith.constant 0 : index
    %39 = vector.load %arg5[%c0_15, %c0_16] : memref<128x24xf32, #tpu.memory_space<vmem>>, vector<128x24xf32>
    %40 = arith.mulf %38, %39 : vector<128x24xf32>
    %41 = vector.shape_cast %40 : vector<128x24xf32> to vector<8x16x24xf32>
    %cst_17 = arith.constant dense<0xFF800000> : vector<8x24xf32>
    %42 = vector.multi_reduction <maximumf>, %41, %cst_17 [1] : vector<8x16x24xf32> to vector<8x24xf32>
    %c0_18 = arith.constant 0 : index
    %c0_19 = arith.constant 0 : index
    %43 = vector.load %arg6[%c0_18, %c0_19] : memref<24x128xf32, #tpu.memory_space<vmem>>, vector<24x128xf32>
    %cst_20 = arith.constant dense<0.000000e+00> : vector<8x128xf32>
    %44 = tpu.matmul %42, %43, %cst_20 {dimension_numbers = #tpu.dot_dimension_numbers<[1], [0], [0], [1], [0, 0, 1, 1], [], []>} : vector<8x24xf32>, vector<24x128xf32>, vector<8x128xf32> -> vector<8x128xf32>
    %c0_21 = arith.constant 0 : index
    %c0_22 = arith.constant 0 : index
    %45 = vector.load %arg7[%c0_21, %c0_22] : memref<1x128xf32, #tpu.memory_space<vmem>>, vector<1x128xf32>
    %46 = vector.broadcast %45 : vector<1x128xf32> to vector<8x128xf32>
    %47 = arith.addf %44, %46 : vector<8x128xf32>
    %c0_23 = arith.constant 0 : index
    %c0_24 = arith.constant 0 : index
    %48 = vector.load %arg8[%c0_23, %c0_24] : memref<8x128xf32, #tpu.memory_space<vmem>>, vector<8x128xf32>
    tpu.vector_store %arg8[%c0_23, %c0_24], %47 {strides = array<i32>} : memref<8x128xf32, #tpu.memory_space<vmem>>, vector<8x128xf32>,
    return
  }
  func.func @transform_0(%arg0: i32) -> (i32, i32, i32) {
    %c0_i32 = arith.constant 0 : i32
    %c0_i32_0 = arith.constant 0 : i32
    %c0_i32_1 = arith.constant 0 : i32
    return %arg0, %c0_i32, %c0_i32_0 : i32, i32, i32
  }
  func.func @transform_1(%arg0: i32) -> (i32, i32) {
    %c0_i32 = arith.constant 0 : i32
    %c0_i32_0 = arith.constant 0 : i32
    %c0_i32_1 = arith.constant 0 : i32
    return %c0_i32, %c0_i32_0 : i32, i32
  }
  func.func @transform_2(%arg0: i32) -> (i32, i32, i32) {
    %c0_i32 = arith.constant 0 : i32
    %c0_i32_0 = arith.constant 0 : i32
    %c0_i32_1 = arith.constant 0 : i32
    %c0_i32_2 = arith.constant 0 : i32
    return %c0_i32, %c0_i32_0, %c0_i32_1 : i32, i32, i32
  }
  func.func @transform_3(%arg0: i32) -> (i32, i32) {
    %c0_i32 = arith.constant 0 : i32
    %c0_i32_0 = arith.constant 0 : i32
    %c0_i32_1 = arith.constant 0 : i32
    return %c0_i32, %c0_i32_0 : i32, i32
  }
  func.func @transform_4(%arg0: i32) -> (i32, i32) {
    %c0_i32 = arith.constant 0 : i32
    %c0_i32_0 = arith.constant 0 : i32
    %c0_i32_1 = arith.constant 0 : i32
    return %c0_i32, %c0_i32_0 : i32, i32
  }
  func.func @transform_5(%arg0: i32) -> (i32, i32) {
    %c0_i32 = arith.constant 0 : i32
    %c0_i32_0 = arith.constant 0 : i32
    %c0_i32_1 = arith.constant 0 : i32
    return %c0_i32, %c0_i32_0 : i32, i32
  }
  func.func @transform_6(%arg0: i32) -> (i32, i32) {
    %c0_i32 = arith.constant 0 : i32
    %c0_i32_0 = arith.constant 0 : i32
    %c0_i32_1 = arith.constant 0 : i32
    return %c0_i32, %c0_i32_0 : i32, i32
  }
  func.func @transform_7(%arg0: i32) -> (i32, i32) {
    %c0_i32 = arith.constant 0 : i32
    %c0_i32_0 = arith.constant 0 : i32
    return %arg0, %c0_i32 : i32, i32
  }
}

</mosaic_0001>

<llo_original>
// kernel: tpu_custom_call.1
$region0: #{tpu_custom_call.1}
  #allocation0 [shape = 'u32[]', space=smem, size = 0x4, offset = 0x4, fixed_abs, tag = 'smem constant byte address 0x4 - core index']
  #allocation1 [shape = 'u32[144,128]{1,0:T(1,128)}', space=vmem, size = 0x12000, scoped, tag = 'internal scratch']
  %s0 = inlined_call_operand.vmem [shape: s32[2,640,1], index: 0, kind: input, shape index: {}]
  %s1 = inlined_call_operand.vmem [shape: f32[20,32], index: 1, kind: input, shape index: {}]
  %s2 = inlined_call_operand.vmem [shape: f32[5,32,24], index: 2, kind: input, shape index: {}]
  %s3 = inlined_call_operand.vmem [shape: f32[1,24], index: 3, kind: input, shape index: {}]
  %s4 = inlined_call_operand.vmem [shape: f32[128,24], index: 4, kind: input, shape index: {}]
  %s5 = inlined_call_operand.vmem [shape: f32[24,128], index: 5, kind: input, shape index: {}]
  %s6 = inlined_call_operand.vmem [shape: f32[1,128], index: 6, kind: input, shape index: {}]
  %s7 = inlined_call_operand.hbm [shape: f32[16,128], index: 7, kind: output, shape index: {}]
  %s8 = sld [smem:[#allocation0]]
  $region61: #{tpu_custom_call.1} parent=0
    _
  %s10 = ssub.s32 1, %s8
  %s11 = scalar_select 0, %s10, %s8
  $region1: #{tpu_custom_call.1} parent=0
    #allocation2 [shape = 'u8[8192]{0}', space=vmem, size = 0x2000, scoped, tag = 'output window, operand 0']
    #allocation3 [shape = 's32[2]{0}', space=sflag, size = 0x8, scoped, tag = 'scoped memory for tpu_custom_call.1']
    %12 = vsyncpa [#allocation3], 0
    %s13 = scalar_lea.sflag [#allocation3], 1
    %14 = vsyncpa %s13, 0
    loop: start=0, step=1, limit=4
    $region2: #{tpu_custom_call.1} parent=1 // loop_pre_header
      _
    $region3: #{tpu_custom_call.1} parent=1 // loop_header
      %s16 = sphi 0, %s20
      %p17 = scmp.ge.s32.totalorder %s16, 4
      %s26 = sphi 0, %s28
      %s29 = sphi 0, %s26
      %s30 = sphi 0, %s29
      %s46 = sphi 0, %s30
      %s50 = sphi 0, %s50
      %s52 = sphi 0, %s50
      %s53 = sphi 0, %s52
      %s67 = sphi 0, %s53
      %s71 = sphi 0, %s71
      %s73 = sphi 0, %s71
      %s74 = sphi 0, %s73
      %s88 = sphi 0, %s74
      %s92 = sphi 0, %s92
      %s94 = sphi 0, %s92
      %s95 = sphi 0, %s94
      %s109 = sphi 0, %s95
      %s113 = sphi 0, %s113
      %s115 = sphi 0, %s113
      %s116 = sphi 0, %s115
      %s130 = sphi 0, %s116
      %s134 = sphi 0, %s134
      %s136 = sphi 0, %s134
      %s137 = sphi 0, %s136
      %s151 = sphi 0, %s137
      %s155 = sphi 0, %s155
      %s157 = sphi 0, %s155
      %s158 = sphi 0, %s157
      %s172 = sphi 0, %s158
      %s178 = sphi 0, %s180
      %s181 = sphi 0, %s178
      %s182 = sphi 0, %s181
      %s198 = sphi 0, %s182
    $region4: #{tpu_custom_call.1} parent=1 // loop_header_branch
      %19 = sbr.rel (%p17) target = $region8
    $region5: #{tpu_custom_call.1} parent=1 // loop_body
      %s21 = ssub.s32 %s16, 1
      %s22 = ssub.s32 %s16, 2
      %s23 = sadd.s32 %s16, 1
      %s24 = ssub.s32 %s16, %s23
      %p25 = scmp.eq.s32.totalorder %s24, 0
      %s27 = sadd.s32 %s26, 1
      %s28 = scalar_select %p25, %s26, %s27
      %p31 = pneg %p25
      %p32 = scmp.eq.s32.totalorder %s16, 1
      %p33 = por %p31, %p32
      %p34 = scmp.ne.s32.totalorder %s26, %s29
      %p35 = scmp.eq.s32.totalorder %s16, 0
      %p36 = por %p34, %p35
      %p37 = scmp.ne.s32.totalorder %s26, %s29
      %p38 = scmp.eq.s32.totalorder %s21, 1
      %p39 = por %p37, %p38
      %p40 = scmp.ne.s32.totalorder %s29, %s30
      %p41 = scmp.eq.s32.totalorder %s21, 0
      %p42 = por %p40, %p41
      %p43 = scmp.ne.s32.totalorder %s29, %s30
      %p44 = scmp.eq.s32.totalorder %s22, 1
      %p45 = por %p43, %p44
      %p47 = scmp.ne.s32.totalorder %s30, %s46
      %p48 = scmp.eq.s32.totalorder %s22, 0
      %p49 = por %p47, %p48
      %s51 = sadd.s32 %s50, 1
      %p54 = scmp.eq.s32.totalorder %s16, 1
      %p55 = scmp.ne.s32.totalorder %s50, %s52
      %p56 = scmp.eq.s32.totalorder %s16, 0
      %p57 = por %p55, %p56
      %p58 = scmp.ne.s32.totalorder %s50, %s52
      %p59 = scmp.eq.s32.totalorder %s21, 1
      %p60 = por %p58, %p59
      %p61 = scmp.ne.s32.totalorder %s52, %s53
      %p62 = scmp.eq.s32.totalorder %s21, 0
      %p63 = por %p61, %p62
      %p64 = scmp.ne.s32.totalorder %s52, %s53
      %p65 = scmp.eq.s32.totalorder %s22, 1
      %p66 = por %p64, %p65
      %p68 = scmp.ne.s32.totalorder %s53, %s67
      %p69 = scmp.eq.s32.totalorder %s22, 0
      %p70 = por %p68, %p69
      %s72 = sadd.s32 %s71, 1
      %p75 = scmp.eq.s32.totalorder %s16, 1
      %p76 = scmp.ne.s32.totalorder %s71, %s73
      %p77 = scmp.eq.s32.totalorder %s16, 0
      %p78 = por %p76, %p77
      %p79 = scmp.ne.s32.totalorder %s71, %s73
      %p80 = scmp.eq.s32.totalorder %s21, 1
      %p81 = por %p79, %p80
      %p82 = scmp.ne.s32.totalorder %s73, %s74
      %p83 = scmp.eq.s32.totalorder %s21, 0
      %p84 = por %p82, %p83
      %p85 = scmp.ne.s32.totalorder %s73, %s74
      %p86 = scmp.eq.s32.totalorder %s22, 1
      %p87 = por %p85, %p86
      %p89 = scmp.ne.s32.totalorder %s74, %s88
      %p90 = scmp.eq.s32.totalorder %s22, 0
      %p91 = por %p89, %p90
      %s93 = sadd.s32 %s92, 1
      %p96 = scmp.eq.s32.totalorder %s16, 1
      %p97 = scmp.ne.s32.totalorder %s92, %s94
      %p98 = scmp.eq.s32.totalorder %s16, 0
      %p99 = por %p97, %p98
      %p100 = scmp.ne.s32.totalorder %s92, %s94
      %p101 = scmp.eq.s32.totalorder %s21, 1
      %p102 = por %p100, %p101
      %p103 = scmp.ne.s32.totalorder %s94, %s95
      %p104 = scmp.eq.s32.totalorder %s21, 0
      %p105 = por %p103, %p104
      %p106 = scmp.ne.s32.totalorder %s94, %s95
      %p107 = scmp.eq.s32.totalorder %s22, 1
      %p108 = por %p106, %p107
      %p110 = scmp.ne.s32.totalorder %s95, %s109
      %p111 = scmp.eq.s32.totalorder %s22, 0
      %p112 = por %p110, %p111
      %s114 = sadd.s32 %s113, 1
      %p117 = scmp.eq.s32.totalorder %s16, 1
      %p118 = scmp.ne.s32.totalorder %s113, %s115
      %p119 = scmp.eq.s32.totalorder %s16, 0
      %p120 = por %p118, %p119
      %p121 = scmp.ne.s32.totalorder %s113, %s115
      %p122 = scmp.eq.s32.totalorder %s21, 1
      %p123 = por %p121, %p122
      %p124 = scmp.ne.s32.totalorder %s115, %s116
      %p125 = scmp.eq.s32.totalorder %s21, 0
      %p126 = por %p124, %p125
      %p127 = scmp.ne.s32.totalorder %s115, %s116
      %p128 = scmp.eq.s32.totalorder %s22, 1
      %p129 = por %p127, %p128
      %p131 = scmp.ne.s32.totalorder %s116, %s130
      %p132 = scmp.eq.s32.totalorder %s22, 0
      %p133 = por %p131, %p132
      %s135 = sadd.s32 %s134, 1
      %p138 = scmp.eq.s32.totalorder %s16, 1
      %p139 = scmp.ne.s32.totalorder %s134, %s136
      %p140 = scmp.eq.s32.totalorder %s16, 0
      %p141 = por %p139, %p140
      %p142 = scmp.ne.s32.totalorder %s134, %s136
      %p143 = scmp.eq.s32.totalorder %s21, 1
      %p144 = por %p142, %p143
      %p145 = scmp.ne.s32.totalorder %s136, %s137
      %p146 = scmp.eq.s32.totalorder %s21, 0
      %p147 = por %p145, %p146
      %p148 = scmp.ne.s32.totalorder %s136, %s137
      %p149 = scmp.eq.s32.totalorder %s22, 1
      %p150 = por %p148, %p149
      %p152 = scmp.ne.s32.totalorder %s137, %s151
      %p153 = scmp.eq.s32.totalorder %s22, 0
      %p154 = por %p152, %p153
      %s156 = sadd.s32 %s155, 1
      %p159 = scmp.eq.s32.totalorder %s16, 1
      %p160 = scmp.ne.s32.totalorder %s155, %s157
      %p161 = scmp.eq.s32.totalorder %s16, 0
      %p162 = por %p160, %p161
      %p163 = scmp.ne.s32.totalorder %s155, %s157
      %p164 = scmp.eq.s32.totalorder %s21, 1
      %p165 = por %p163, %p164
      %p166 = scmp.ne.s32.totalorder %s157, %s158
      %p167 = scmp.eq.s32.totalorder %s21, 0
      %p168 = por %p166, %p167
      %p169 = scmp.ne.s32.totalorder %s157, %s158
      %p170 = scmp.eq.s32.totalorder %s22, 1
      %p171 = por %p169, %p170
      %p173 = scmp.ne.s32.totalorder %s158, %s172
      %p174 = scmp.eq.s32.totalorder %s22, 0
      %p175 = por %p173, %p174
      %s176 = ssub.s32 %s16, %s23
      %p177 = scmp.eq.s32.totalorder %s176, 0
      %s179 = sadd.s32 %s178, 1
      %s180 = scalar_select %p177, %s178, %s179
      %p183 = pneg %p177
      %p184 = scmp.eq.s32.totalorder %s16, 1
      %p185 = por %p183, %p184
      %p186 = scmp.ne.s32.totalorder %s178, %s181
      %p187 = scmp.eq.s32.totalorder %s16, 0
      %p188 = por %p186, %p187
      %p189 = scmp.ne.s32.totalorder %s178, %s181
      %p190 = scmp.eq.s32.totalorder %s21, 1
      %p191 = por %p189, %p190
      %p192 = scmp.ne.s32.totalorder %s181, %s182
      %p193 = scmp.eq.s32.totalorder %s21, 0
      %p194 = por %p192, %p193
      %p195 = scmp.ne.s32.totalorder %s181, %s182
      %p196 = scmp.eq.s32.totalorder %s22, 1
      %p197 = por %p195, %p196
      %p199 = scmp.ne.s32.totalorder %s182, %s198
      %p200 = scmp.eq.s32.totalorder %s22, 0
      %p201 = por %p199, %p200
      %p202 = scmp.le.s32.totalorder 1, %s16
      %p203 = scmp.lt.s32.totalorder %s16, 3
      %p204 = pnand %p202, %p203
      %p205 = pneg %p204
      // Predicated region
      $region9: #{tpu_custom_call.1} parent=5 // pred_check
        _
      $region10: #{tpu_custom_call.1} parent=5 // pred_check_branch
        %207 = sbr.rel (%p204) target = $region12
      $region11: #{tpu_custom_call.1} parent=5 // pred_region
        %s208 = ssub.s32 %s16, 1
        // Predicated region
        $region13: #{tpu_custom_call.1} parent=11 // pred_check
          %p209 = pneg %p63
        $region14: #{tpu_custom_call.1} parent=11 // pred_check_branch
          %211 = sbr.rel (%p209) target = $region16
        $region15: #{tpu_custom_call.1} parent=11 // pred_region
          _
        $region16: #{tpu_custom_call.1} parent=11 // pred_fallthru
          _
        // Predicated region
        $region17: #{tpu_custom_call.1} parent=11 // pred_check
          %p212 = pneg %p84
        $region18: #{tpu_custom_call.1} parent=11 // pred_check_branch
          %214 = sbr.rel (%p212) target = $region20
        $region19: #{tpu_custom_call.1} parent=11 // pred_region
          _
        $region20: #{tpu_custom_call.1} parent=11 // pred_fallthru
          _
        // Predicated region
        $region21: #{tpu_custom_call.1} parent=11 // pred_check
          %p215 = pneg %p105
        $region22: #{tpu_custom_call.1} parent=11 // pred_check_branch
          %217 = sbr.rel (%p215) target = $region24
        $region23: #{tpu_custom_call.1} parent=11 // pred_region
          _
        $region24: #{tpu_custom_call.1} parent=11 // pred_fallthru
          _
        // Predicated region
        $region25: #{tpu_custom_call.1} parent=11 // pred_check
          %p218 = pneg %p126
        $region26: #{tpu_custom_call.1} parent=11 // pred_check_branch
          %220 = sbr.rel (%p218) target = $region28
        $region27: #{tpu_custom_call.1} parent=11 // pred_region
          _
        $region28: #{tpu_custom_call.1} parent=11 // pred_fallthru
          _
        // Predicated region
        $region29: #{tpu_custom_call.1} parent=11 // pred_check
          %p221 = pneg %p147
        $region30: #{tpu_custom_call.1} parent=11 // pred_check_branch
          %223 = sbr.rel (%p221) target = $region32
        $region31: #{tpu_custom_call.1} parent=11 // pred_region
          _
        $region32: #{tpu_custom_call.1} parent=11 // pred_fallthru
          _
        // Predicated region
        $region33: #{tpu_custom_call.1} parent=11 // pred_check
          %p224 = pneg %p168
        $region34: #{tpu_custom_call.1} parent=11 // pred_check_branch
          %226 = sbr.rel (%p224) target = $region36
        $region35: #{tpu_custom_call.1} parent=11 // pred_region
          _
        $region36: #{tpu_custom_call.1} parent=11 // pred_fallthru
          _
      $region12: #{tpu_custom_call.1} parent=5 // pred_fallthru
        _
      %p227 = scmp.lt.s32.totalorder %s16, 2
      // Predicated region
      $region37: #{tpu_custom_call.1} parent=5 // pred_check
        %p228 = pneg %p227
      $region38: #{tpu_custom_call.1} parent=5 // pred_check_branch
        %230 = sbr.rel (%p228) target = $region40
      $region39: #{tpu_custom_call.1} parent=5 // pred_region
        // Predicated region
        $region41: #{tpu_custom_call.1} parent=39 // pred_check
          %p231 = pneg %p36
        $region42: #{tpu_custom_call.1} parent=39 // pred_check_branch
          %233 = sbr.rel (%p231) target = $region44
        $region43: #{tpu_custom_call.1} parent=39 // pred_region
          %p234 = scmp.lt.s32.totalorder %s16, 1
          %s235 = scalar_select %p234, %s16, 1
          %s236 = smul.addr %s235, 80
          %s237 = smul.addr %s236, 8
          %s238 = scalar_lea.vmem %s0, %s237
        $region44: #{tpu_custom_call.1} parent=39 // pred_fallthru
          _
      $region40: #{tpu_custom_call.1} parent=5 // pred_fallthru
        _
      %p239 = scmp.le.s32.totalorder 1, %s16
      %p240 = scmp.lt.s32.totalorder %s16, 3
      %p241 = pnand %p239, %p240
      %p242 = pneg %p241
      // Predicated region
      $region45: #{tpu_custom_call.1} parent=5 // pred_check
        _
      $region46: #{tpu_custom_call.1} parent=5 // pred_check_branch
        %244 = sbr.rel (%p241) target = $region48
      $region47: #{tpu_custom_call.1} parent=5 // pred_region
        %s245 = ssub.s32 %s16, 1
        %p246 = scmp.lt.s32.totalorder %s21, 1
        %s247 = scalar_select %p246, %s21, 1
        %s248 = smul.addr %s247, 80
        %s249 = smul.addr %s248, 8
        %s250 = scalar_lea.vmem %s0, %s249
        %p251 = pneg %p42
        %p252 = pneg %p39
        %p253 = pneg %p63
        %p254 = pneg %p60
        %p255 = pneg %p84
        %p256 = pneg %p81
        %p257 = pneg %p105
        %p258 = pneg %p102
        %p259 = pneg %p126
        %p260 = pneg %p123
        %p261 = pneg %p147
        %p262 = pneg %p144
        %p263 = pneg %p168
        %p264 = pneg %p165
        %p265 = pneg %p194
        %p266 = pneg %p191
        %s267 = sand.u32 %s181, 1
        %s268 = scalar_lea.sflag [#allocation3], %s267
        %s269 = sand.u32 %s181, 1
        %s270 = smul.addr %s269, 8
        %s271 = scalar_lea.vmem [#allocation2], %s270
        %p272 = scmp.lt.s32.totalorder %s21, 1
        %s273 = scalar_select %p272, %s21, 1
        %s274 = smul.addr %s273, 80
        %s275 = smul.addr %s274, 8
        %s276 = scalar_lea.vmem %s0, %s275
        %v277 = vld [vmem:[%s276] sm:$0xff]
        %v278 = vld [vmem:[%s276 + $0x8] sm:$0xff]
        %v279 = vld [vmem:[%s276 + $0x10] sm:$0xff]
        %v280 = vld [vmem:[%s276 + $0x18] sm:$0xff]
        %v281 = vld [vmem:[%s276 + $0x20] sm:$0xff]
        %v282 = vld [vmem:[%s276 + $0x28] sm:$0xff]
        %v283 = vld [vmem:[%s276 + $0x30] sm:$0xff]
        %v284 = vld [vmem:[%s276 + $0x38] sm:$0xff]
        %v285 = vld [vmem:[%s276 + $0x40] sm:$0xff]
        %v286 = vld [vmem:[%s276 + $0x48] sm:$0xff]
        %v287 = vld [vmem:[%s276 + $0x50] sm:$0xff]
        %v288 = vld [vmem:[%s276 + $0x58] sm:$0xff]
        %v289 = vld [vmem:[%s276 + $0x60] sm:$0xff]
        %v290 = vld [vmem:[%s276 + $0x68] sm:$0xff]
        %v291 = vld [vmem:[%s276 + $0x70] sm:$0xff]
        %v292 = vld [vmem:[%s276 + $0x78] sm:$0xff]
        %v293 = vld [vmem:[%s276 + $0x80] sm:$0xff]
        %v294 = vld [vmem:[%s276 + $0x88] sm:$0xff]
        %v295 = vld [vmem:[%s276 + $0x90] sm:$0xff]
        %v296 = vld [vmem:[%s276 + $0x98] sm:$0xff]
        %v297 = vld [vmem:[%s276 + $0xa0] sm:$0xff]
        %v298 = vld [vmem:[%s276 + $0xa8] sm:$0xff]
        %v299 = vld [vmem:[%s276 + $0xb0] sm:$0xff]
        %v300 = vld [vmem:[%s276 + $0xb8] sm:$0xff]
        %v301 = vld [vmem:[%s276 + $0xc0] sm:$0xff]
        %v302 = vld [vmem:[%s276 + $0xc8] sm:$0xff]
        %v303 = vld [vmem:[%s276 + $0xd0] sm:$0xff]
        %v304 = vld [vmem:[%s276 + $0xd8] sm:$0xff]
        %v305 = vld [vmem:[%s276 + $0xe0] sm:$0xff]
        %v306 = vld [vmem:[%s276 + $0xe8] sm:$0xff]
        %v307 = vld [vmem:[%s276 + $0xf0] sm:$0xff]
        %v308 = vld [vmem:[%s276 + $0xf8] sm:$0xff]
        %v309 = vld [vmem:[%s276 + $0x100] sm:$0xff]
        %v310 = vld [vmem:[%s276 + $0x108] sm:$0xff]
        %v311 = vld [vmem:[%s276 + $0x110] sm:$0xff]
        %v312 = vld [vmem:[%s276 + $0x118] sm:$0xff]
        %v313 = vld [vmem:[%s276 + $0x120] sm:$0xff]
        %v314 = vld [vmem:[%s276 + $0x128] sm:$0xff]
        %v315 = vld [vmem:[%s276 + $0x130] sm:$0xff]
        %v316 = vld [vmem:[%s276 + $0x138] sm:$0xff]
        %v317 = vld [vmem:[%s276 + $0x140] sm:$0xff]
        %v318 = vld [vmem:[%s276 + $0x148] sm:$0xff]
        %v319 = vld [vmem:[%s276 + $0x150] sm:$0xff]
        %v320 = vld [vmem:[%s276 + $0x158] sm:$0xff]
        %v321 = vld [vmem:[%s276 + $0x160] sm:$0xff]
        %v322 = vld [vmem:[%s276 + $0x168] sm:$0xff]
        %v323 = vld [vmem:[%s276 + $0x170] sm:$0xff]
        %v324 = vld [vmem:[%s276 + $0x178] sm:$0xff]
        %v325 = vld [vmem:[%s276 + $0x180] sm:$0xff]
        %v326 = vld [vmem:[%s276 + $0x188] sm:$0xff]
        %v327 = vld [vmem:[%s276 + $0x190] sm:$0xff]
        %v328 = vld [vmem:[%s276 + $0x198] sm:$0xff]
        %v329 = vld [vmem:[%s276 + $0x1a0] sm:$0xff]
        %v330 = vld [vmem:[%s276 + $0x1a8] sm:$0xff]
        %v331 = vld [vmem:[%s276 + $0x1b0] sm:$0xff]
        %v332 = vld [vmem:[%s276 + $0x1b8] sm:$0xff]
        %v333 = vld [vmem:[%s276 + $0x1c0] sm:$0xff]
        %v334 = vld [vmem:[%s276 + $0x1c8] sm:$0xff]
        %v335 = vld [vmem:[%s276 + $0x1d0] sm:$0xff]
        %v336 = vld [vmem:[%s276 + $0x1d8] sm:$0xff]
        %v337 = vld [vmem:[%s276 + $0x1e0] sm:$0xff]
        %v338 = vld [vmem:[%s276 + $0x1e8] sm:$0xff]
        %v339 = vld [vmem:[%s276 + $0x1f0] sm:$0xff]
        %v340 = vld [vmem:[%s276 + $0x1f8] sm:$0xff]
        %v341 = vld [vmem:[%s276 + $0x200] sm:$0xff]
        %v342 = vld [vmem:[%s276 + $0x208] sm:$0xff]
        %v343 = vld [vmem:[%s276 + $0x210] sm:$0xff]
        %v344 = vld [vmem:[%s276 + $0x218] sm:$0xff]
        %v345 = vld [vmem:[%s276 + $0x220] sm:$0xff]
        %v346 = vld [vmem:[%s276 + $0x228] sm:$0xff]
        %v347 = vld [vmem:[%s276 + $0x230] sm:$0xff]
        %v348 = vld [vmem:[%s276 + $0x238] sm:$0xff]
        %v349 = vld [vmem:[%s276 + $0x240] sm:$0xff]
        %v350 = vld [vmem:[%s276 + $0x248] sm:$0xff]
        %v351 = vld [vmem:[%s276 + $0x250] sm:$0xff]
        %v352 = vld [vmem:[%s276 + $0x258] sm:$0xff]
        %v353 = vld [vmem:[%s276 + $0x260] sm:$0xff]
        %v354 = vld [vmem:[%s276 + $0x268] sm:$0xff]
        %v355 = vld [vmem:[%s276 + $0x270] sm:$0xff]
        %v356 = vld [vmem:[%s276 + $0x278] sm:$0xff]
        %v357 = vlaneseq
        %v358 = vand.u32 %v357, 127
        %359 = vset.pattern.permute.xlu0 0
        %360 = vperm.xlu0 %359, %v277
        %v361 = vpop.permute.xlu0 %360
        %362 = vset.pattern.permute.xlu0 0
        %363 = vperm.xlu0 %362, %v278
        %v364 = vpop.permute.xlu0 %363
        %365 = vset.pattern.permute.xlu0 0
        %366 = vperm.xlu0 %365, %v279
        %v367 = vpop.permute.xlu0 %366
        %368 = vset.pattern.permute.xlu0 0
        %369 = vperm.xlu0 %368, %v280
        %v370 = vpop.permute.xlu0 %369
        %371 = vset.pattern.permute.xlu0 0
        %372 = vperm.xlu0 %371, %v281
        %v373 = vpop.permute.xlu0 %372
        %374 = vset.pattern.permute.xlu0 0
        %375 = vperm.xlu0 %374, %v282
        %v376 = vpop.permute.xlu0 %375
        %377 = vset.pattern.permute.xlu0 0
        %378 = vperm.xlu0 %377, %v283
        %v379 = vpop.permute.xlu0 %378
        %380 = vset.pattern.permute.xlu0 0
        %381 = vperm.xlu0 %380, %v284
        %v382 = vpop.permute.xlu0 %381
        %383 = vset.pattern.permute.xlu0 0
        %384 = vperm.xlu0 %383, %v285
        %v385 = vpop.permute.xlu0 %384
        %386 = vset.pattern.permute.xlu0 0
        %387 = vperm.xlu0 %386, %v286
        %v388 = vpop.permute.xlu0 %387
        %389 = vset.pattern.permute.xlu0 0
        %390 = vperm.xlu0 %389, %v287
        %v391 = vpop.permute.xlu0 %390
        %392 = vset.pattern.permute.xlu0 0
        %393 = vperm.xlu0 %392, %v288
        %v394 = vpop.permute.xlu0 %393
        %395 = vset.pattern.permute.xlu0 0
        %396 = vperm.xlu0 %395, %v289
        %v397 = vpop.permute.xlu0 %396
        %398 = vset.pattern.permute.xlu0 0
        %399 = vperm.xlu0 %398, %v290
        %v400 = vpop.permute.xlu0 %399
        %401 = vset.pattern.permute.xlu0 0
        %402 = vperm.xlu0 %401, %v291
        %v403 = vpop.permute.xlu0 %402
        %404 = vset.pattern.permute.xlu0 0
        %405 = vperm.xlu0 %404, %v292
        %v406 = vpop.permute.xlu0 %405
        %407 = vset.pattern.permute.xlu0 0
        %408 = vperm.xlu0 %407, %v293
        %v409 = vpop.permute.xlu0 %408
        %410 = vset.pattern.permute.xlu0 0
        %411 = vperm.xlu0 %410, %v294
        %v412 = vpop.permute.xlu0 %411
        %413 = vset.pattern.permute.xlu0 0
        %414 = vperm.xlu0 %413, %v295
        %v415 = vpop.permute.xlu0 %414
        %416 = vset.pattern.permute.xlu0 0
        %417 = vperm.xlu0 %416, %v296
        %v418 = vpop.permute.xlu0 %417
        %419 = vset.pattern.permute.xlu0 0
        %420 = vperm.xlu0 %419, %v297
        %v421 = vpop.permute.xlu0 %420
        %422 = vset.pattern.permute.xlu0 0
        %423 = vperm.xlu0 %422, %v298
        %v424 = vpop.permute.xlu0 %423
        %425 = vset.pattern.permute.xlu0 0
        %426 = vperm.xlu0 %425, %v299
        %v427 = vpop.permute.xlu0 %426
        %428 = vset.pattern.permute.xlu0 0
        %429 = vperm.xlu0 %428, %v300
        %v430 = vpop.permute.xlu0 %429
        %431 = vset.pattern.permute.xlu0 0
        %432 = vperm.xlu0 %431, %v301
        %v433 = vpop.permute.xlu0 %432
        %434 = vset.pattern.permute.xlu0 0
        %435 = vperm.xlu0 %434, %v302
        %v436 = vpop.permute.xlu0 %435
        %437 = vset.pattern.permute.xlu0 0
        %438 = vperm.xlu0 %437, %v303
        %v439 = vpop.permute.xlu0 %438
        %440 = vset.pattern.permute.xlu0 0
        %441 = vperm.xlu0 %440, %v304
        %v442 = vpop.permute.xlu0 %441
        %443 = vset.pattern.permute.xlu0 0
        %444 = vperm.xlu0 %443, %v305
        %v445 = vpop.permute.xlu0 %444
        %446 = vset.pattern.permute.xlu0 0
        %447 = vperm.xlu0 %446, %v306
        %v448 = vpop.permute.xlu0 %447
        %449 = vset.pattern.permute.xlu0 0
        %450 = vperm.xlu0 %449, %v307
        %v451 = vpop.permute.xlu0 %450
        %452 = vset.pattern.permute.xlu0 0
        %453 = vperm.xlu0 %452, %v308
        %v454 = vpop.permute.xlu0 %453
        %455 = vset.pattern.permute.xlu0 0
        %456 = vperm.xlu0 %455, %v309
        %v457 = vpop.permute.xlu0 %456
        %458 = vset.pattern.permute.xlu0 0
        %459 = vperm.xlu0 %458, %v310
        %v460 = vpop.permute.xlu0 %459
        %461 = vset.pattern.permute.xlu0 0
        %462 = vperm.xlu0 %461, %v311
        %v463 = vpop.permute.xlu0 %462
        %464 = vset.pattern.permute.xlu0 0
        %465 = vperm.xlu0 %464, %v312
        %v466 = vpop.permute.xlu0 %465
        %467 = vset.pattern.permute.xlu0 0
        %468 = vperm.xlu0 %467, %v313
        %v469 = vpop.permute.xlu0 %468
        %470 = vset.pattern.permute.xlu0 0
        %471 = vperm.xlu0 %470, %v314
        %v472 = vpop.permute.xlu0 %471
        %473 = vset.pattern.permute.xlu0 0
        %474 = vperm.xlu0 %473, %v315
        %v475 = vpop.permute.xlu0 %474
        %476 = vset.pattern.permute.xlu0 0
        %477 = vperm.xlu0 %476, %v316
        %v478 = vpop.permute.xlu0 %477
        %479 = vset.pattern.permute.xlu0 0
        %480 = vperm.xlu0 %479, %v317
        %v481 = vpop.permute.xlu0 %480
        %482 = vset.pattern.permute.xlu0 0
        %483 = vperm.xlu0 %482, %v318
        %v484 = vpop.permute.xlu0 %483
        %485 = vset.pattern.permute.xlu0 0
        %486 = vperm.xlu0 %485, %v319
        %v487 = vpop.permute.xlu0 %486
        %488 = vset.pattern.permute.xlu0 0
        %489 = vperm.xlu0 %488, %v320
        %v490 = vpop.permute.xlu0 %489
        %491 = vset.pattern.permute.xlu0 0
        %492 = vperm.xlu0 %491, %v321
        %v493 = vpop.permute.xlu0 %492
        %494 = vset.pattern.permute.xlu0 0
        %495 = vperm.xlu0 %494, %v322
        %v496 = vpop.permute.xlu0 %495
        %497 = vset.pattern.permute.xlu0 0
        %498 = vperm.xlu0 %497, %v323
        %v499 = vpop.permute.xlu0 %498
        %500 = vset.pattern.permute.xlu0 0
        %501 = vperm.xlu0 %500, %v324
        %v502 = vpop.permute.xlu0 %501
        %503 = vset.pattern.permute.xlu0 0
        %504 = vperm.xlu0 %503, %v325
        %v505 = vpop.permute.xlu0 %504
        %506 = vset.pattern.permute.xlu0 0
        %507 = vperm.xlu0 %506, %v326
        %v508 = vpop.permute.xlu0 %507
        %509 = vset.pattern.permute.xlu0 0
        %510 = vperm.xlu0 %509, %v327
        %v511 = vpop.permute.xlu0 %510
        %512 = vset.pattern.permute.xlu0 0
        %513 = vperm.xlu0 %512, %v328
        %v514 = vpop.permute.xlu0 %513
        %515 = vset.pattern.permute.xlu0 0
        %516 = vperm.xlu0 %515, %v329
        %v517 = vpop.permute.xlu0 %516
        %518 = vset.pattern.permute.xlu0 0
        %519 = vperm.xlu0 %518, %v330
        %v520 = vpop.permute.xlu0 %519
        %521 = vset.pattern.permute.xlu0 0
        %522 = vperm.xlu0 %521, %v331
        %v523 = vpop.permute.xlu0 %522
        %524 = vset.pattern.permute.xlu0 0
        %525 = vperm.xlu0 %524, %v332
        %v526 = vpop.permute.xlu0 %525
        %527 = vset.pattern.permute.xlu0 0
        %528 = vperm.xlu0 %527, %v333
        %v529 = vpop.permute.xlu0 %528
        %530 = vset.pattern.permute.xlu0 0
        %531 = vperm.xlu0 %530, %v334
        %v532 = vpop.permute.xlu0 %531
        %533 = vset.pattern.permute.xlu0 0
        %534 = vperm.xlu0 %533, %v335
        %v535 = vpop.permute.xlu0 %534
        %536 = vset.pattern.permute.xlu0 0
        %537 = vperm.xlu0 %536, %v336
        %v538 = vpop.permute.xlu0 %537
        %539 = vset.pattern.permute.xlu0 0
        %540 = vperm.xlu0 %539, %v337
        %v541 = vpop.permute.xlu0 %540
        %542 = vset.pattern.permute.xlu0 0
        %543 = vperm.xlu0 %542, %v338
        %v544 = vpop.permute.xlu0 %543
        %545 = vset.pattern.permute.xlu0 0
        %546 = vperm.xlu0 %545, %v339
        %v547 = vpop.permute.xlu0 %546
        %548 = vset.pattern.permute.xlu0 0
        %549 = vperm.xlu0 %548, %v340
        %v550 = vpop.permute.xlu0 %549
        %551 = vset.pattern.permute.xlu0 0
        %552 = vperm.xlu0 %551, %v341
        %v553 = vpop.permute.xlu0 %552
        %554 = vset.pattern.permute.xlu0 0
        %555 = vperm.xlu0 %554, %v342
        %v556 = vpop.permute.xlu0 %555
        %557 = vset.pattern.permute.xlu0 0
        %558 = vperm.xlu0 %557, %v343
        %v559 = vpop.permute.xlu0 %558
        %560 = vset.pattern.permute.xlu0 0
        %561 = vperm.xlu0 %560, %v344
        %v562 = vpop.permute.xlu0 %561
        %563 = vset.pattern.permute.xlu0 0
        %564 = vperm.xlu0 %563, %v345
        %v565 = vpop.permute.xlu0 %564
        %566 = vset.pattern.permute.xlu0 0
        %567 = vperm.xlu0 %566, %v346
        %v568 = vpop.permute.xlu0 %567
        %569 = vset.pattern.permute.xlu0 0
        %570 = vperm.xlu0 %569, %v347
        %v571 = vpop.permute.xlu0 %570
        %572 = vset.pattern.permute.xlu0 0
        %573 = vperm.xlu0 %572, %v348
        %v574 = vpop.permute.xlu0 %573
        %575 = vset.pattern.permute.xlu0 0
        %576 = vperm.xlu0 %575, %v349
        %v577 = vpop.permute.xlu0 %576
        %578 = vset.pattern.permute.xlu0 0
        %579 = vperm.xlu0 %578, %v350
        %v580 = vpop.permute.xlu0 %579
        %581 = vset.pattern.permute.xlu0 0
        %582 = vperm.xlu0 %581, %v351
        %v583 = vpop.permute.xlu0 %582
        %584 = vset.pattern.permute.xlu0 0
        %585 = vperm.xlu0 %584, %v352
        %v586 = vpop.permute.xlu0 %585
        %587 = vset.pattern.permute.xlu0 0
        %588 = vperm.xlu0 %587, %v353
        %v589 = vpop.permute.xlu0 %588
        %590 = vset.pattern.permute.xlu0 0
        %591 = vperm.xlu0 %590, %v354
        %v592 = vpop.permute.xlu0 %591
        %593 = vset.pattern.permute.xlu0 0
        %594 = vperm.xlu0 %593, %v355
        %v595 = vpop.permute.xlu0 %594
        %596 = vset.pattern.permute.xlu0 0
        %597 = vperm.xlu0 %596, %v356
        %v598 = vpop.permute.xlu0 %597
        %vm599 = vcmp.eq.s32.totalorder %v358, %v361
        %vm600 = vcmp.eq.s32.totalorder %v358, %v364
        %vm601 = vcmp.eq.s32.totalorder %v358, %v367
        %vm602 = vcmp.eq.s32.totalorder %v358, %v370
        %vm603 = vcmp.eq.s32.totalorder %v358, %v373
        %vm604 = vcmp.eq.s32.totalorder %v358, %v376
        %vm605 = vcmp.eq.s32.totalorder %v358, %v379
        %vm606 = vcmp.eq.s32.totalorder %v358, %v382
        %vm607 = vcmp.eq.s32.totalorder %v358, %v385
        %vm608 = vcmp.eq.s32.totalorder %v358, %v388
        %vm609 = vcmp.eq.s32.totalorder %v358, %v391
        %vm610 = vcmp.eq.s32.totalorder %v358, %v394
        %vm611 = vcmp.eq.s32.totalorder %v358, %v397
        %vm612 = vcmp.eq.s32.totalorder %v358, %v400
        %vm613 = vcmp.eq.s32.totalorder %v358, %v403
        %vm614 = vcmp.eq.s32.totalorder %v358, %v406
        %vm615 = vcmp.eq.s32.totalorder %v358, %v409
        %vm616 = vcmp.eq.s32.totalorder %v358, %v412
        %vm617 = vcmp.eq.s32.totalorder %v358, %v415
        %vm618 = vcmp.eq.s32.totalorder %v358, %v418
        %vm619 = vcmp.eq.s32.totalorder %v358, %v421
        %vm620 = vcmp.eq.s32.totalorder %v358, %v424
        %vm621 = vcmp.eq.s32.totalorder %v358, %v427
        %vm622 = vcmp.eq.s32.totalorder %v358, %v430
        %vm623 = vcmp.eq.s32.totalorder %v358, %v433
        %vm624 = vcmp.eq.s32.totalorder %v358, %v436
        %vm625 = vcmp.eq.s32.totalorder %v358, %v439
        %vm626 = vcmp.eq.s32.totalorder %v358, %v442
        %vm627 = vcmp.eq.s32.totalorder %v358, %v445
        %vm628 = vcmp.eq.s32.totalorder %v358, %v448
        %vm629 = vcmp.eq.s32.totalorder %v358, %v451
        %vm630 = vcmp.eq.s32.totalorder %v358, %v454
        %vm631 = vcmp.eq.s32.totalorder %v358, %v457
        %vm632 = vcmp.eq.s32.totalorder %v358, %v460
        %vm633 = vcmp.eq.s32.totalorder %v358, %v463
        %vm634 = vcmp.eq.s32.totalorder %v358, %v466
        %vm635 = vcmp.eq.s32.totalorder %v358, %v469
        %vm636 = vcmp.eq.s32.totalorder %v358, %v472
        %vm637 = vcmp.eq.s32.totalorder %v358, %v475
        %vm638 = vcmp.eq.s32.totalorder %v358, %v478
        %vm639 = vcmp.eq.s32.totalorder %v358, %v481
        %vm640 = vcmp.eq.s32.totalorder %v358, %v484
        %vm641 = vcmp.eq.s32.totalorder %v358, %v487
        %vm642 = vcmp.eq.s32.totalorder %v358, %v490
        %vm643 = vcmp.eq.s32.totalorder %v358, %v493
        %vm644 = vcmp.eq.s32.totalorder %v358, %v496
        %vm645 = vcmp.eq.s32.totalorder %v358, %v499
        %vm646 = vcmp.eq.s32.totalorder %v358, %v502
        %vm647 = vcmp.eq.s32.totalorder %v358, %v505
        %vm648 = vcmp.eq.s32.totalorder %v358, %v508
        %vm649 = vcmp.eq.s32.totalorder %v358, %v511
        %vm650 = vcmp.eq.s32.totalorder %v358, %v514
        %vm651 = vcmp.eq.s32.totalorder %v358, %v517
        %vm652 = vcmp.eq.s32.totalorder %v358, %v520
        %vm653 = vcmp.eq.s32.totalorder %v358, %v523
        %vm654 = vcmp.eq.s32.totalorder %v358, %v526
        %vm655 = vcmp.eq.s32.totalorder %v358, %v529
        %vm656 = vcmp.eq.s32.totalorder %v358, %v532
        %vm657 = vcmp.eq.s32.totalorder %v358, %v535
        %vm658 = vcmp.eq.s32.totalorder %v358, %v538
        %vm659 = vcmp.eq.s32.totalorder %v358, %v541
        %vm660 = vcmp.eq.s32.totalorder %v358, %v544
        %vm661 = vcmp.eq.s32.totalorder %v358, %v547
        %vm662 = vcmp.eq.s32.totalorder %v358, %v550
        %vm663 = vcmp.eq.s32.totalorder %v358, %v553
        %vm664 = vcmp.eq.s32.totalorder %v358, %v556
        %vm665 = vcmp.eq.s32.totalorder %v358, %v559
        %vm666 = vcmp.eq.s32.totalorder %v358, %v562
        %vm667 = vcmp.eq.s32.totalorder %v358, %v565
        %vm668 = vcmp.eq.s32.totalorder %v358, %v568
        %vm669 = vcmp.eq.s32.totalorder %v358, %v571
        %vm670 = vcmp.eq.s32.totalorder %v358, %v574
        %vm671 = vcmp.eq.s32.totalorder %v358, %v577
        %vm672 = vcmp.eq.s32.totalorder %v358, %v580
        %vm673 = vcmp.eq.s32.totalorder %v358, %v583
        %vm674 = vcmp.eq.s32.totalorder %v358, %v586
        %vm675 = vcmp.eq.s32.totalorder %v358, %v589
        %vm676 = vcmp.eq.s32.totalorder %v358, %v592
        %vm677 = vcmp.eq.s32.totalorder %v358, %v595
        %vm678 = vcmp.eq.s32.totalorder %v358, %v598
        %v679 = vsel %vm599, 1, 0
        %v680 = vsel %vm600, 1, 0
        %v681 = vsel %vm601, 1, 0
        %v682 = vsel %vm602, 1, 0
        %v683 = vsel %vm603, 1, 0
        %v684 = vsel %vm604, 1, 0
        %v685 = vsel %vm605, 1, 0
        %v686 = vsel %vm606, 1, 0
        %v687 = vsel %vm607, 1, 0
        %v688 = vsel %vm608, 1, 0
        %v689 = vsel %vm609, 1, 0
        %v690 = vsel %vm610, 1, 0
        %v691 = vsel %vm611, 1, 0
        %v692 = vsel %vm612, 1, 0
        %v693 = vsel %vm613, 1, 0
        %v694 = vsel %vm614, 1, 0
        %v695 = vsel %vm615, 1, 0
        %v696 = vsel %vm616, 1, 0
        %v697 = vsel %vm617, 1, 0
        %v698 = vsel %vm618, 1, 0
        %v699 = vsel %vm619, 1, 0
        %v700 = vsel %vm620, 1, 0
        %v701 = vsel %vm621, 1, 0
        %v702 = vsel %vm622, 1, 0
        %v703 = vsel %vm623, 1, 0
        %v704 = vsel %vm624, 1, 0
        %v705 = vsel %vm625, 1, 0
        %v706 = vsel %vm626, 1, 0
        %v707 = vsel %vm627, 1, 0
        %v708 = vsel %vm628, 1, 0
        %v709 = vsel %vm629, 1, 0
        %v710 = vsel %vm630, 1, 0
        %v711 = vsel %vm631, 1, 0
        %v712 = vsel %vm632, 1, 0
        %v713 = vsel %vm633, 1, 0
        %v714 = vsel %vm634, 1, 0
        %v715 = vsel %vm635, 1, 0
        %v716 = vsel %vm636, 1, 0
        %v717 = vsel %vm637, 1, 0
        %v718 = vsel %vm638, 1, 0
        %v719 = vsel %vm639, 1, 0
        %v720 = vsel %vm640, 1, 0
        %v721 = vsel %vm641, 1, 0
        %v722 = vsel %vm642, 1, 0
        %v723 = vsel %vm643, 1, 0
        %v724 = vsel %vm644, 1, 0
        %v725 = vsel %vm645, 1, 0
        %v726 = vsel %vm646, 1, 0
        %v727 = vsel %vm647, 1, 0
        %v728 = vsel %vm648, 1, 0
        %v729 = vsel %vm649, 1, 0
        %v730 = vsel %vm650, 1, 0
        %v731 = vsel %vm651, 1, 0
        %v732 = vsel %vm652, 1, 0
        %v733 = vsel %vm653, 1, 0
        %v734 = vsel %vm654, 1, 0
        %v735 = vsel %vm655, 1, 0
        %v736 = vsel %vm656, 1, 0
        %v737 = vsel %vm657, 1, 0
        %v738 = vsel %vm658, 1, 0
        %v739 = vsel %vm659, 1, 0
        %v740 = vsel %vm660, 1, 0
        %v741 = vsel %vm661, 1, 0
        %v742 = vsel %vm662, 1, 0
        %v743 = vsel %vm663, 1, 0
        %v744 = vsel %vm664, 1, 0
        %v745 = vsel %vm665, 1, 0
        %v746 = vsel %vm666, 1, 0
        %v747 = vsel %vm667, 1, 0
        %v748 = vsel %vm668, 1, 0
        %v749 = vsel %vm669, 1, 0
        %v750 = vsel %vm670, 1, 0
        %v751 = vsel %vm671, 1, 0
        %v752 = vsel %vm672, 1, 0
        %v753 = vsel %vm673, 1, 0
        %v754 = vsel %vm674, 1, 0
        %v755 = vsel %vm675, 1, 0
        %v756 = vsel %vm676, 1, 0
        %v757 = vsel %vm677, 1, 0
        %v758 = vsel %vm678, 1, 0
        %v759 = vcvt.s32.f32 %v679
        %v760 = vcvt.s32.f32 %v680
        %v761 = vcvt.s32.f32 %v681
        %v762 = vcvt.s32.f32 %v682
        %v763 = vcvt.s32.f32 %v683
        %v764 = vcvt.s32.f32 %v684
        %v765 = vcvt.s32.f32 %v685
        %v766 = vcvt.s32.f32 %v686
        %v767 = vcvt.s32.f32 %v687
        %v768 = vcvt.s32.f32 %v688
        %v769 = vcvt.s32.f32 %v689
        %v770 = vcvt.s32.f32 %v690
        %v771 = vcvt.s32.f32 %v691
        %v772 = vcvt.s32.f32 %v692
        %v773 = vcvt.s32.f32 %v693
        %v774 = vcvt.s32.f32 %v694
        %v775 = vcvt.s32.f32 %v695
        %v776 = vcvt.s32.f32 %v696
        %v777 = vcvt.s32.f32 %v697
        %v778 = vcvt.s32.f32 %v698
        %v779 = vcvt.s32.f32 %v699
        %v780 = vcvt.s32.f32 %v700
        %v781 = vcvt.s32.f32 %v701
        %v782 = vcvt.s32.f32 %v702
        %v783 = vcvt.s32.f32 %v703
        %v784 = vcvt.s32.f32 %v704
        %v785 = vcvt.s32.f32 %v705
        %v786 = vcvt.s32.f32 %v706
        %v787 = vcvt.s32.f32 %v707
        %v788 = vcvt.s32.f32 %v708
        %v789 = vcvt.s32.f32 %v709
        %v790 = vcvt.s32.f32 %v710
        %v791 = vcvt.s32.f32 %v711
        %v792 = vcvt.s32.f32 %v712
        %v793 = vcvt.s32.f32 %v713
        %v794 = vcvt.s32.f32 %v714
        %v795 = vcvt.s32.f32 %v715
        %v796 = vcvt.s32.f32 %v716
        %v797 = vcvt.s32.f32 %v717
        %v798 = vcvt.s32.f32 %v718
        %v799 = vcvt.s32.f32 %v719
        %v800 = vcvt.s32.f32 %v720
        %v801 = vcvt.s32.f32 %v721
        %v802 = vcvt.s32.f32 %v722
        %v803 = vcvt.s32.f32 %v723
        %v804 = vcvt.s32.f32 %v724
        %v805 = vcvt.s32.f32 %v725
        %v806 = vcvt.s32.f32 %v726
        %v807 = vcvt.s32.f32 %v727
        %v808 = vcvt.s32.f32 %v728
        %v809 = vcvt.s32.f32 %v729
        %v810 = vcvt.s32.f32 %v730
        %v811 = vcvt.s32.f32 %v731
        %v812 = vcvt.s32.f32 %v732
        %v813 = vcvt.s32.f32 %v733
        %v814 = vcvt.s32.f32 %v734
        %v815 = vcvt.s32.f32 %v735
        %v816 = vcvt.s32.f32 %v736
        %v817 = vcvt.s32.f32 %v737
        %v818 = vcvt.s32.f32 %v738
        %v819 = vcvt.s32.f32 %v739
        %v820 = vcvt.s32.f32 %v740
        %v821 = vcvt.s32.f32 %v741
        %v822 = vcvt.s32.f32 %v742
        %v823 = vcvt.s32.f32 %v743
        %v824 = vcvt.s32.f32 %v744
        %v825 = vcvt.s32.f32 %v745
        %v826 = vcvt.s32.f32 %v746
        %v827 = vcvt.s32.f32 %v747
        %v828 = vcvt.s32.f32 %v748
        %v829 = vcvt.s32.f32 %v749
        %v830 = vcvt.s32.f32 %v750
        %v831 = vcvt.s32.f32 %v751
        %v832 = vcvt.s32.f32 %v752
        %v833 = vcvt.s32.f32 %v753
        %v834 = vcvt.s32.f32 %v754
        %v835 = vcvt.s32.f32 %v755
        %v836 = vcvt.s32.f32 %v756
        %v837 = vcvt.s32.f32 %v757
        %v838 = vcvt.s32.f32 %v758
        %v839 = vld [vmem:[%s1] sm:$0xff]
        %v840 = vld [vmem:[%s1 + $0x8] sm:$0xff]
        %v841 = vld [vmem:[%s1 + $0x10] sm:$0xf]
        %vm842 = vcmask 162816
        %v844 = vsel %vm842, %v759, 0
        %v847 = vsel %vm842, %v760, 0
        %v850 = vsel %vm842, %v761, 0
        %v853 = vsel %vm842, %v762, 0
        %v856 = vsel %vm842, %v763, 0
        %v859 = vsel %vm842, %v764, 0
        %v862 = vsel %vm842, %v765, 0
        %v865 = vsel %vm842, %v766, 0
        %v868 = vsel %vm842, %v767, 0
        %v871 = vsel %vm842, %v768, 0
        %v874 = vsel %vm842, %v769, 0
        %v877 = vsel %vm842, %v770, 0
        %v880 = vsel %vm842, %v771, 0
        %v883 = vsel %vm842, %v772, 0
        %v886 = vsel %vm842, %v773, 0
        %v889 = vsel %vm842, %v774, 0
        %v892 = vsel %vm842, %v775, 0
        %v895 = vsel %vm842, %v776, 0
        %v898 = vsel %vm842, %v777, 0
        %v901 = vsel %vm842, %v778, 0
        %v904 = vsel %vm842, %v779, 0
        %v907 = vsel %vm842, %v780, 0
        %v910 = vsel %vm842, %v781, 0
        %v913 = vsel %vm842, %v782, 0
        %v916 = vsel %vm842, %v783, 0
        %v919 = vsel %vm842, %v784, 0
        %v922 = vsel %vm842, %v785, 0
        %v925 = vsel %vm842, %v786, 0
        %v928 = vsel %vm842, %v787, 0
        %v931 = vsel %vm842, %v788, 0
        %v934 = vsel %vm842, %v789, 0
        %v937 = vsel %vm842, %v790, 0
        %v940 = vsel %vm842, %v791, 0
        %v943 = vsel %vm842, %v792, 0
        %v946 = vsel %vm842, %v793, 0
        %v949 = vsel %vm842, %v794, 0
        %v952 = vsel %vm842, %v795, 0
        %v955 = vsel %vm842, %v796, 0
        %v958 = vsel %vm842, %v797, 0
        %v961 = vsel %vm842, %v798, 0
        %v964 = vsel %vm842, %v799, 0
        %v967 = vsel %vm842, %v800, 0
        %v970 = vsel %vm842, %v801, 0
        %v973 = vsel %vm842, %v802, 0
        %v976 = vsel %vm842, %v803, 0
        %v979 = vsel %vm842, %v804, 0
        %v982 = vsel %vm842, %v805, 0
        %v985 = vsel %vm842, %v806, 0
        %v988 = vsel %vm842, %v807, 0
        %v991 = vsel %vm842, %v808, 0
        %v994 = vsel %vm842, %v809, 0
        %v997 = vsel %vm842, %v810, 0
        %v1000 = vsel %vm842, %v811, 0
        %v1003 = vsel %vm842, %v812, 0
        %v1006 = vsel %vm842, %v813, 0
        %v1009 = vsel %vm842, %v814, 0
        %v1012 = vsel %vm842, %v815, 0
        %v1015 = vsel %vm842, %v816, 0
        %v1018 = vsel %vm842, %v817, 0
        %v1021 = vsel %vm842, %v818, 0
        %v1024 = vsel %vm842, %v819, 0
        %v1027 = vsel %vm842, %v820, 0
        %v1030 = vsel %vm842, %v821, 0
        %v1033 = vsel %vm842, %v822, 0
        %v1036 = vsel %vm842, %v823, 0
        %v1039 = vsel %vm842, %v824, 0
        %v1042 = vsel %vm842, %v825, 0
        %v1045 = vsel %vm842, %v826, 0
        %v1048 = vsel %vm842, %v827, 0
        %v1051 = vsel %vm842, %v828, 0
        %v1054 = vsel %vm842, %v829, 0
        %v1057 = vsel %vm842, %v830, 0
        %v1060 = vsel %vm842, %v831, 0
        %v1063 = vsel %vm842, %v832, 0
        %v1066 = vsel %vm842, %v833, 0
        %v1069 = vsel %vm842, %v834, 0
        %v1072 = vsel %vm842, %v835, 0
        %v1075 = vsel %vm842, %v836, 0
        %v1078 = vsel %vm842, %v837, 0
        %v1081 = vsel %vm842, %v838, 0
        %vm1083 = vcmask 1043456
        %v1085 = vsel %vm1083, %v841, 0
        %1087 = vmatprep.subr.mxu0 0.0
        %1088 = vmatpush1.msra.mxu0 0.0
        %1089 = vmatprep.subr.mxu0 0.0
        %1090 = vmatpush1.msra.mxu0 0.0
        %1091 = vmatprep.subr.mxu0 0.0
        %1092 = vmatpush1.msra.mxu0 0.0
        %1093 = vmatprep.subr.mxu0 0.0
        %1094 = vmatpush1.msra.mxu0 0.0
        %1095 = vmatprep.subr.mxu0 0.0
        %1096 = vmatpush1.msra.mxu0 0.0
        %1097 = vmatprep.subr.mxu0 0.0
        %1098 = vmatpush1.msra.mxu0 0.0
        %1099 = vmatprep.subr.mxu0 0.0
        %1100 = vmatpush1.msra.mxu0 0.0
        %1101 = vmatprep.subr.mxu0 0.0
        %1102 = vmatpush1.msra.mxu0 0.0
        %1103 = vmatprep.subr.mxu0 0.0
        %1104 = vmatpush1.msra.mxu0 0.0
        %1105 = vmatprep.subr.mxu0 0.0
        %1106 = vmatpush1.msra.mxu0 0.0
        %1107 = vmatprep.subr.mxu0 0.0
        %1108 = vmatpush1.msra.mxu0 0.0
        %1109 = vmatprep.subr.mxu0 0.0
        %1110 = vmatpush1.msra.mxu0 0.0
        %1111 = vmatprep.subr.mxu0 0.0
        %1112 = vmatpush1.msra.mxu0 0.0
        %1113 = vmatprep.subr.mxu0 0.0
        %1114 = vmatpush1.msra.mxu0 %v1085
        %1115 = vmatprep.subr.mxu0 0.0
        %1116 = vmatpush1.msra.mxu0 %v840
        %1117 = vmatprep.subr.mxu0 0.0
        %1118 = vmatpush1.msra.mxu0 %v839
        %1119 = vmatprep.subr.mxu0 0.0
        %1120 = vmatpush2.msra.mxu0 0.0
        %1121 = vmatprep.subr.mxu0 0.0
        %1122 = vmatpush2.msra.mxu0 0.0
        %1123 = vmatprep.subr.mxu0 0.0
        %1124 = vmatpush2.msra.mxu0 0.0
        %1125 = vmatprep.subr.mxu0 0.0
        %1126 = vmatpush2.msra.mxu0 0.0
        %1127 = vmatprep.subr.mxu0 0.0
        %1128 = vmatpush2.msra.mxu0 0.0
        %1129 = vmatprep.subr.mxu0 0.0
        %1130 = vmatpush2.msra.mxu0 0.0
        %1131 = vmatprep.subr.mxu0 0.0
        %1132 = vmatpush2.msra.mxu0 0.0
        %1133 = vmatprep.subr.mxu0 0.0
        %1134 = vmatpush2.msra.mxu0 0.0
        %1135 = vmatprep.subr.mxu0 0.0
        %1136 = vmatpush2.msra.mxu0 0.0
        %1137 = vmatprep.subr.mxu0 0.0
        %1138 = vmatpush2.msra.mxu0 0.0
        %1139 = vmatprep.subr.mxu0 0.0
        %1140 = vmatpush2.msra.mxu0 0.0
        %1141 = vmatprep.subr.mxu0 0.0
        %1142 = vmatpush2.msra.mxu0 0.0
        %1143 = vmatprep.subr.mxu0 0.0
        %1144 = vmatpush2.msra.mxu0 0.0
        %1145 = vmatprep.subr.mxu0 0.0
        %1146 = vmatpush2.msra.mxu0 0.0
        %1147 = vmatprep.subr.mxu0 0.0
        %1148 = vmatpush2.msra.mxu0 0.0
        %1149 = vmatprep.subr.mxu0 0.0
        %1150 = vmatpush2.msra.mxu0 0.0
        %1151 = vmatprep.mubr.f32.mxu0 0.0
        %1152 = vmatmul.mubr.f32.gmra.mxu0 %v844
        %v1153 = vpop.f32.mrf.mxu0
        %v1154 = vadd.f32 0.0, %v1153
        %v1155 = vpop.f32.mrf.mxu0
        %1156 = vmatprep.mubr.f32.mxu0 0.0
        %1157 = vmatmul.mubr.f32.gmra.mxu0 %v847
        %v1158 = vpop.f32.mrf.mxu0
        %v1159 = vadd.f32 0.0, %v1158
        %v1160 = vpop.f32.mrf.mxu0
        %1161 = vmatprep.mubr.f32.mxu0 0.0
        %1162 = vmatmul.mubr.f32.gmra.mxu0 %v850
        %v1163 = vpop.f32.mrf.mxu0
        %v1164 = vadd.f32 0.0, %v1163
        %v1165 = vpop.f32.mrf.mxu0
        %1166 = vmatprep.mubr.f32.mxu0 0.0
        %1167 = vmatmul.mubr.f32.gmra.mxu0 %v853
        %v1168 = vpop.f32.mrf.mxu0
        %v1169 = vadd.f32 0.0, %v1168
        %v1170 = vpop.f32.mrf.mxu0
        %1171 = vmatprep.mubr.f32.mxu0 0.0
        %1172 = vmatmul.mubr.f32.gmra.mxu0 %v856
        %v1173 = vpop.f32.mrf.mxu0
        %v1174 = vadd.f32 0.0, %v1173
        %v1175 = vpop.f32.mrf.mxu0
        %1176 = vmatprep.mubr.f32.mxu0 0.0
        %1177 = vmatmul.mubr.f32.gmra.mxu0 %v859
        %v1178 = vpop.f32.mrf.mxu0
        %v1179 = vadd.f32 0.0, %v1178
        %v1180 = vpop.f32.mrf.mxu0
        %1181 = vmatprep.mubr.f32.mxu0 0.0
        %1182 = vmatmul.mubr.f32.gmra.mxu0 %v862
        %v1183 = vpop.f32.mrf.mxu0
        %v1184 = vadd.f32 0.0, %v1183
        %v1185 = vpop.f32.mrf.mxu0
        %1186 = vmatprep.mubr.f32.mxu0 0.0
        %1187 = vmatmul.mubr.f32.gmra.mxu0 %v865
        %v1188 = vpop.f32.mrf.mxu0
        %v1189 = vadd.f32 0.0, %v1188
        %v1190 = vpop.f32.mrf.mxu0
        %1191 = vmatprep.mubr.f32.mxu0 0.0
        %1192 = vmatmul.mubr.f32.gmra.mxu0 %v868
        %v1193 = vpop.f32.mrf.mxu0
        %v1194 = vadd.f32 0.0, %v1193
        %v1195 = vpop.f32.mrf.mxu0
        %1196 = vmatprep.mubr.f32.mxu0 0.0
        %1197 = vmatmul.mubr.f32.gmra.mxu0 %v871
        %v1198 = vpop.f32.mrf.mxu0
        %v1199 = vadd.f32 0.0, %v1198
        %v1200 = vpop.f32.mrf.mxu0
        %1201 = vmatprep.mubr.f32.mxu0 0.0
        %1202 = vmatmul.mubr.f32.gmra.mxu0 %v874
        %v1203 = vpop.f32.mrf.mxu0
        %v1204 = vadd.f32 0.0, %v1203
        %v1205 = vpop.f32.mrf.mxu0
        %1206 = vmatprep.mubr.f32.mxu0 0.0
        %1207 = vmatmul.mubr.f32.gmra.mxu0 %v877
        %v1208 = vpop.f32.mrf.mxu0
        %v1209 = vadd.f32 0.0, %v1208
        %v1210 = vpop.f32.mrf.mxu0
        %1211 = vmatprep.mubr.f32.mxu0 0.0
        %1212 = vmatmul.mubr.f32.gmra.mxu0 %v880
        %v1213 = vpop.f32.mrf.mxu0
        %v1214 = vadd.f32 0.0, %v1213
        %v1215 = vpop.f32.mrf.mxu0
        %1216 = vmatprep.mubr.f32.mxu0 0.0
        %1217 = vmatmul.mubr.f32.gmra.mxu0 %v883
        %v1218 = vpop.f32.mrf.mxu0
        %v1219 = vadd.f32 0.0, %v1218
        %v1220 = vpop.f32.mrf.mxu0
        %1221 = vmatprep.mubr.f32.mxu0 0.0
        %1222 = vmatmul.mubr.f32.gmra.mxu0 %v886
        %v1223 = vpop.f32.mrf.mxu0
        %v1224 = vadd.f32 0.0, %v1223
        %v1225 = vpop.f32.mrf.mxu0
        %1226 = vmatprep.mubr.f32.mxu0 0.0
        %1227 = vmatmul.mubr.f32.gmra.mxu0 %v889
        %v1228 = vpop.f32.mrf.mxu0
        %v1229 = vadd.f32 0.0, %v1228
        %v1230 = vpop.f32.mrf.mxu0
        %1231 = vmatprep.mubr.f32.mxu0 0.0
        %1232 = vmatmul.mubr.f32.gmra.mxu0 %v892
        %v1233 = vpop.f32.mrf.mxu0
        %v1234 = vadd.f32 0.0, %v1233
        %v1235 = vpop.f32.mrf.mxu0
        %1236 = vmatprep.mubr.f32.mxu0 0.0
        %1237 = vmatmul.mubr.f32.gmra.mxu0 %v895
        %v1238 = vpop.f32.mrf.mxu0
        %v1239 = vadd.f32 0.0, %v1238
        %v1240 = vpop.f32.mrf.mxu0
        %1241 = vmatprep.mubr.f32.mxu0 0.0
        %1242 = vmatmul.mubr.f32.gmra.mxu0 %v898
        %v1243 = vpop.f32.mrf.mxu0
        %v1244 = vadd.f32 0.0, %v1243
        %v1245 = vpop.f32.mrf.mxu0
        %1246 = vmatprep.mubr.f32.mxu0 0.0
        %1247 = vmatmul.mubr.f32.gmra.mxu0 %v901
        %v1248 = vpop.f32.mrf.mxu0
        %v1249 = vadd.f32 0.0, %v1248
        %v1250 = vpop.f32.mrf.mxu0
        %1251 = vmatprep.mubr.f32.mxu0 0.0
        %1252 = vmatmul.mubr.f32.gmra.mxu0 %v904
        %v1253 = vpop.f32.mrf.mxu0
        %v1254 = vadd.f32 0.0, %v1253
        %v1255 = vpop.f32.mrf.mxu0
        %1256 = vmatprep.mubr.f32.mxu0 0.0
        %1257 = vmatmul.mubr.f32.gmra.mxu0 %v907
        %v1258 = vpop.f32.mrf.mxu0
        %v1259 = vadd.f32 0.0, %v1258
        %v1260 = vpop.f32.mrf.mxu0
        %1261 = vmatprep.mubr.f32.mxu0 0.0
        %1262 = vmatmul.mubr.f32.gmra.mxu0 %v910
        %v1263 = vpop.f32.mrf.mxu0
        %v1264 = vadd.f32 0.0, %v1263
        %v1265 = vpop.f32.mrf.mxu0
        %1266 = vmatprep.mubr.f32.mxu0 0.0
        %1267 = vmatmul.mubr.f32.gmra.mxu0 %v913
        %v1268 = vpop.f32.mrf.mxu0
        %v1269 = vadd.f32 0.0, %v1268
        %v1270 = vpop.f32.mrf.mxu0
        %1271 = vmatprep.mubr.f32.mxu0 0.0
        %1272 = vmatmul.mubr.f32.gmra.mxu0 %v916
        %v1273 = vpop.f32.mrf.mxu0
        %v1274 = vadd.f32 0.0, %v1273
        %v1275 = vpop.f32.mrf.mxu0
        %1276 = vmatprep.mubr.f32.mxu0 0.0
        %1277 = vmatmul.mubr.f32.gmra.mxu0 %v919
        %v1278 = vpop.f32.mrf.mxu0
        %v1279 = vadd.f32 0.0, %v1278
        %v1280 = vpop.f32.mrf.mxu0
        %1281 = vmatprep.mubr.f32.mxu0 0.0
        %1282 = vmatmul.mubr.f32.gmra.mxu0 %v922
        %v1283 = vpop.f32.mrf.mxu0
        %v1284 = vadd.f32 0.0, %v1283
        %v1285 = vpop.f32.mrf.mxu0
        %1286 = vmatprep.mubr.f32.mxu0 0.0
        %1287 = vmatmul.mubr.f32.gmra.mxu0 %v925
        %v1288 = vpop.f32.mrf.mxu0
        %v1289 = vadd.f32 0.0, %v1288
        %v1290 = vpop.f32.mrf.mxu0
        %1291 = vmatprep.mubr.f32.mxu0 0.0
        %1292 = vmatmul.mubr.f32.gmra.mxu0 %v928
        %v1293 = vpop.f32.mrf.mxu0
        %v1294 = vadd.f32 0.0, %v1293
        %v1295 = vpop.f32.mrf.mxu0
        %1296 = vmatprep.mubr.f32.mxu0 0.0
        %1297 = vmatmul.mubr.f32.gmra.mxu0 %v931
        %v1298 = vpop.f32.mrf.mxu0
        %v1299 = vadd.f32 0.0, %v1298
        %v1300 = vpop.f32.mrf.mxu0
        %1301 = vmatprep.mubr.f32.mxu0 0.0
        %1302 = vmatmul.mubr.f32.gmra.mxu0 %v934
        %v1303 = vpop.f32.mrf.mxu0
        %v1304 = vadd.f32 0.0, %v1303
        %v1305 = vpop.f32.mrf.mxu0
        %1306 = vmatprep.mubr.f32.mxu0 0.0
        %1307 = vmatmul.mubr.f32.gmra.mxu0 %v937
        %v1308 = vpop.f32.mrf.mxu0
        %v1309 = vadd.f32 0.0, %v1308
        %v1310 = vpop.f32.mrf.mxu0
        %1311 = vmatprep.mubr.f32.mxu0 0.0
        %1312 = vmatmul.mubr.f32.gmra.mxu0 %v940
        %v1313 = vpop.f32.mrf.mxu0
        %v1314 = vadd.f32 0.0, %v1313
        %v1315 = vpop.f32.mrf.mxu0
        %1316 = vmatprep.mubr.f32.mxu0 0.0
        %1317 = vmatmul.mubr.f32.gmra.mxu0 %v943
        %v1318 = vpop.f32.mrf.mxu0
        %v1319 = vadd.f32 0.0, %v1318
        %v1320 = vpop.f32.mrf.mxu0
        %1321 = vmatprep.mubr.f32.mxu0 0.0
        %1322 = vmatmul.mubr.f32.gmra.mxu0 %v946
        %v1323 = vpop.f32.mrf.mxu0
        %v1324 = vadd.f32 0.0, %v1323
        %v1325 = vpop.f32.mrf.mxu0
        %1326 = vmatprep.mubr.f32.mxu0 0.0
        %1327 = vmatmul.mubr.f32.gmra.mxu0 %v949
        %v1328 = vpop.f32.mrf.mxu0
        %v1329 = vadd.f32 0.0, %v1328
        %v1330 = vpop.f32.mrf.mxu0
        %1331 = vmatprep.mubr.f32.mxu0 0.0
        %1332 = vmatmul.mubr.f32.gmra.mxu0 %v952
        %v1333 = vpop.f32.mrf.mxu0
        %v1334 = vadd.f32 0.0, %v1333
        %v1335 = vpop.f32.mrf.mxu0
        %1336 = vmatprep.mubr.f32.mxu0 0.0
        %1337 = vmatmul.mubr.f32.gmra.mxu0 %v955
        %v1338 = vpop.f32.mrf.mxu0
        %v1339 = vadd.f32 0.0, %v1338
        %v1340 = vpop.f32.mrf.mxu0
        %1341 = vmatprep.mubr.f32.mxu0 0.0
        %1342 = vmatmul.mubr.f32.gmra.mxu0 %v958
        %v1343 = vpop.f32.mrf.mxu0
        %v1344 = vadd.f32 0.0, %v1343
        %v1345 = vpop.f32.mrf.mxu0
        %1346 = vmatprep.mubr.f32.mxu0 0.0
        %1347 = vmatmul.mubr.f32.gmra.mxu0 %v961
        %v1348 = vpop.f32.mrf.mxu0
        %v1349 = vadd.f32 0.0, %v1348
        %v1350 = vpop.f32.mrf.mxu0
        %1351 = vmatprep.mubr.f32.mxu0 0.0
        %1352 = vmatmul.mubr.f32.gmra.mxu0 %v964
        %v1353 = vpop.f32.mrf.mxu0
        %v1354 = vadd.f32 0.0, %v1353
        %v1355 = vpop.f32.mrf.mxu0
        %1356 = vmatprep.mubr.f32.mxu0 0.0
        %1357 = vmatmul.mubr.f32.gmra.mxu0 %v967
        %v1358 = vpop.f32.mrf.mxu0
        %v1359 = vadd.f32 0.0, %v1358
        %v1360 = vpop.f32.mrf.mxu0
        %1361 = vmatprep.mubr.f32.mxu0 0.0
        %1362 = vmatmul.mubr.f32.gmra.mxu0 %v970
        %v1363 = vpop.f32.mrf.mxu0
        %v1364 = vadd.f32 0.0, %v1363
        %v1365 = vpop.f32.mrf.mxu0
        %1366 = vmatprep.mubr.f32.mxu0 0.0
        %1367 = vmatmul.mubr.f32.gmra.mxu0 %v973
        %v1368 = vpop.f32.mrf.mxu0
        %v1369 = vadd.f32 0.0, %v1368
        %v1370 = vpop.f32.mrf.mxu0
        %1371 = vmatprep.mubr.f32.mxu0 0.0
        %1372 = vmatmul.mubr.f32.gmra.mxu0 %v976
        %v1373 = vpop.f32.mrf.mxu0
        %v1374 = vadd.f32 0.0, %v1373
        %v1375 = vpop.f32.mrf.mxu0
        %1376 = vmatprep.mubr.f32.mxu0 0.0
        %1377 = vmatmul.mubr.f32.gmra.mxu0 %v979
        %v1378 = vpop.f32.mrf.mxu0
        %v1379 = vadd.f32 0.0, %v1378
        %v1380 = vpop.f32.mrf.mxu0
        %1381 = vmatprep.mubr.f32.mxu0 0.0
        %1382 = vmatmul.mubr.f32.gmra.mxu0 %v982
        %v1383 = vpop.f32.mrf.mxu0
        %v1384 = vadd.f32 0.0, %v1383
        %v1385 = vpop.f32.mrf.mxu0
        %1386 = vmatprep.mubr.f32.mxu0 0.0
        %1387 = vmatmul.mubr.f32.gmra.mxu0 %v985
        %v1388 = vpop.f32.mrf.mxu0
        %v1389 = vadd.f32 0.0, %v1388
        %v1390 = vpop.f32.mrf.mxu0
        %1391 = vmatprep.mubr.f32.mxu0 0.0
        %1392 = vmatmul.mubr.f32.gmra.mxu0 %v988
        %v1393 = vpop.f32.mrf.mxu0
        %v1394 = vadd.f32 0.0, %v1393
        %v1395 = vpop.f32.mrf.mxu0
        %1396 = vmatprep.mubr.f32.mxu0 0.0
        %1397 = vmatmul.mubr.f32.gmra.mxu0 %v991
        %v1398 = vpop.f32.mrf.mxu0
        %v1399 = vadd.f32 0.0, %v1398
        %v1400 = vpop.f32.mrf.mxu0
        %1401 = vmatprep.mubr.f32.mxu0 0.0
        %1402 = vmatmul.mubr.f32.gmra.mxu0 %v994
        %v1403 = vpop.f32.mrf.mxu0
        %v1404 = vadd.f32 0.0, %v1403
        %v1405 = vpop.f32.mrf.mxu0
        %1406 = vmatprep.mubr.f32.mxu0 0.0
        %1407 = vmatmul.mubr.f32.gmra.mxu0 %v997
        %v1408 = vpop.f32.mrf.mxu0
        %v1409 = vadd.f32 0.0, %v1408
        %v1410 = vpop.f32.mrf.mxu0
        %1411 = vmatprep.mubr.f32.mxu0 0.0
        %1412 = vmatmul.mubr.f32.gmra.mxu0 %v1000
        %v1413 = vpop.f32.mrf.mxu0
        %v1414 = vadd.f32 0.0, %v1413
        %v1415 = vpop.f32.mrf.mxu0
        %1416 = vmatprep.mubr.f32.mxu0 0.0
        %1417 = vmatmul.mubr.f32.gmra.mxu0 %v1003
        %v1418 = vpop.f32.mrf.mxu0
        %v1419 = vadd.f32 0.0, %v1418
        %v1420 = vpop.f32.mrf.mxu0
        %1421 = vmatprep.mubr.f32.mxu0 0.0
        %1422 = vmatmul.mubr.f32.gmra.mxu0 %v1006
        %v1423 = vpop.f32.mrf.mxu0
        %v1424 = vadd.f32 0.0, %v1423
        %v1425 = vpop.f32.mrf.mxu0
        %1426 = vmatprep.mubr.f32.mxu0 0.0
        %1427 = vmatmul.mubr.f32.gmra.mxu0 %v1009
        %v1428 = vpop.f32.mrf.mxu0
        %v1429 = vadd.f32 0.0, %v1428
        %v1430 = vpop.f32.mrf.mxu0
        %1431 = vmatprep.mubr.f32.mxu0 0.0
        %1432 = vmatmul.mubr.f32.gmra.mxu0 %v1012
        %v1433 = vpop.f32.mrf.mxu0
        %v1434 = vadd.f32 0.0, %v1433
        %v1435 = vpop.f32.mrf.mxu0
        %1436 = vmatprep.mubr.f32.mxu0 0.0
        %1437 = vmatmul.mubr.f32.gmra.mxu0 %v1015
        %v1438 = vpop.f32.mrf.mxu0
        %v1439 = vadd.f32 0.0, %v1438
        %v1440 = vpop.f32.mrf.mxu0
        %1441 = vmatprep.mubr.f32.mxu0 0.0
        %1442 = vmatmul.mubr.f32.gmra.mxu0 %v1018
        %v1443 = vpop.f32.mrf.mxu0
        %v1444 = vadd.f32 0.0, %v1443
        %v1445 = vpop.f32.mrf.mxu0
        %1446 = vmatprep.mubr.f32.mxu0 0.0
        %1447 = vmatmul.mubr.f32.gmra.mxu0 %v1021
        %v1448 = vpop.f32.mrf.mxu0
        %v1449 = vadd.f32 0.0, %v1448
        %v1450 = vpop.f32.mrf.mxu0
        %1451 = vmatprep.mubr.f32.mxu0 0.0
        %1452 = vmatmul.mubr.f32.gmra.mxu0 %v1024
        %v1453 = vpop.f32.mrf.mxu0
        %v1454 = vadd.f32 0.0, %v1453
        %v1455 = vpop.f32.mrf.mxu0
        %1456 = vmatprep.mubr.f32.mxu0 0.0
        %1457 = vmatmul.mubr.f32.gmra.mxu0 %v1027
        %v1458 = vpop.f32.mrf.mxu0
        %v1459 = vadd.f32 0.0, %v1458
        %v1460 = vpop.f32.mrf.mxu0
        %1461 = vmatprep.mubr.f32.mxu0 0.0
        %1462 = vmatmul.mubr.f32.gmra.mxu0 %v1030
        %v1463 = vpop.f32.mrf.mxu0
        %v1464 = vadd.f32 0.0, %v1463
        %v1465 = vpop.f32.mrf.mxu0
        %1466 = vmatprep.mubr.f32.mxu0 0.0
        %1467 = vmatmul.mubr.f32.gmra.mxu0 %v1033
        %v1468 = vpop.f32.mrf.mxu0
        %v1469 = vadd.f32 0.0, %v1468
        %v1470 = vpop.f32.mrf.mxu0
        %1471 = vmatprep.mubr.f32.mxu0 0.0
        %1472 = vmatmul.mubr.f32.gmra.mxu0 %v1036
        %v1473 = vpop.f32.mrf.mxu0
        %v1474 = vadd.f32 0.0, %v1473
        %v1475 = vpop.f32.mrf.mxu0
        %1476 = vmatprep.mubr.f32.mxu0 0.0
        %1477 = vmatmul.mubr.f32.gmra.mxu0 %v1039
        %v1478 = vpop.f32.mrf.mxu0
        %v1479 = vadd.f32 0.0, %v1478
        %v1480 = vpop.f32.mrf.mxu0
        %1481 = vmatprep.mubr.f32.mxu0 0.0
        %1482 = vmatmul.mubr.f32.gmra.mxu0 %v1042
        %v1483 = vpop.f32.mrf.mxu0
        %v1484 = vadd.f32 0.0, %v1483
        %v1485 = vpop.f32.mrf.mxu0
        %1486 = vmatprep.mubr.f32.mxu0 0.0
        %1487 = vmatmul.mubr.f32.gmra.mxu0 %v1045
        %v1488 = vpop.f32.mrf.mxu0
        %v1489 = vadd.f32 0.0, %v1488
        %v1490 = vpop.f32.mrf.mxu0
        %1491 = vmatprep.mubr.f32.mxu0 0.0
        %1492 = vmatmul.mubr.f32.gmra.mxu0 %v1048
        %v1493 = vpop.f32.mrf.mxu0
        %v1494 = vadd.f32 0.0, %v1493
        %v1495 = vpop.f32.mrf.mxu0
        %1496 = vmatprep.mubr.f32.mxu0 0.0
        %1497 = vmatmul.mubr.f32.gmra.mxu0 %v1051
        %v1498 = vpop.f32.mrf.mxu0
        %v1499 = vadd.f32 0.0, %v1498
        %v1500 = vpop.f32.mrf.mxu0
        %1501 = vmatprep.mubr.f32.mxu0 0.0
        %1502 = vmatmul.mubr.f32.gmra.mxu0 %v1054
        %v1503 = vpop.f32.mrf.mxu0
        %v1504 = vadd.f32 0.0, %v1503
        %v1505 = vpop.f32.mrf.mxu0
        %1506 = vmatprep.mubr.f32.mxu0 0.0
        %1507 = vmatmul.mubr.f32.gmra.mxu0 %v1057
        %v1508 = vpop.f32.mrf.mxu0
        %v1509 = vadd.f32 0.0, %v1508
        %v1510 = vpop.f32.mrf.mxu0
        %1511 = vmatprep.mubr.f32.mxu0 0.0
        %1512 = vmatmul.mubr.f32.gmra.mxu0 %v1060
        %v1513 = vpop.f32.mrf.mxu0
        %v1514 = vadd.f32 0.0, %v1513
        %v1515 = vpop.f32.mrf.mxu0
        %1516 = vmatprep.mubr.f32.mxu0 0.0
        %1517 = vmatmul.mubr.f32.gmra.mxu0 %v1063
        %v1518 = vpop.f32.mrf.mxu0
        %v1519 = vadd.f32 0.0, %v1518
        %v1520 = vpop.f32.mrf.mxu0
        %1521 = vmatprep.mubr.f32.mxu0 0.0
        %1522 = vmatmul.mubr.f32.gmra.mxu0 %v1066
        %v1523 = vpop.f32.mrf.mxu0
        %v1524 = vadd.f32 0.0, %v1523
        %v1525 = vpop.f32.mrf.mxu0
        %1526 = vmatprep.mubr.f32.mxu0 0.0
        %1527 = vmatmul.mubr.f32.gmra.mxu0 %v1069
        %v1528 = vpop.f32.mrf.mxu0
        %v1529 = vadd.f32 0.0, %v1528
        %v1530 = vpop.f32.mrf.mxu0
        %1531 = vmatprep.mubr.f32.mxu0 0.0
        %1532 = vmatmul.mubr.f32.gmra.mxu0 %v1072
        %v1533 = vpop.f32.mrf.mxu0
        %v1534 = vadd.f32 0.0, %v1533
        %v1535 = vpop.f32.mrf.mxu0
        %1536 = vmatprep.mubr.f32.mxu0 0.0
        %1537 = vmatmul.mubr.f32.gmra.mxu0 %v1075
        %v1538 = vpop.f32.mrf.mxu0
        %v1539 = vadd.f32 0.0, %v1538
        %v1540 = vpop.f32.mrf.mxu0
        %1541 = vmatprep.mubr.f32.mxu0 0.0
        %1542 = vmatmul.mubr.f32.gmra.mxu0 %v1078
        %v1543 = vpop.f32.mrf.mxu0
        %v1544 = vadd.f32 0.0, %v1543
        %v1545 = vpop.f32.mrf.mxu0
        %1546 = vmatprep.mubr.f32.mxu0 0.0
        %1547 = vmatmul.mubr.f32.gmra.mxu0 %v1081
        %v1548 = vpop.f32.mrf.mxu0
        %v1549 = vadd.f32 0.0, %v1548
        %v1550 = vpop.f32.mrf.mxu0
        %1551 = vdwg.mxu0
        %v1552 = vld [vmem:[%s2] sm:$0xff]
        %v1553 = vld [vmem:[%s2 + $0x8] sm:$0xff]
        %v1554 = vld [vmem:[%s2 + $0x10] sm:$0xff]
        %v1555 = vld [vmem:[%s2 + $0x18] sm:$0xff]
        %v1556 = vld [vmem:[%s2 + $0x20] sm:$0xff]
        %v1557 = vld [vmem:[%s2 + $0x28] sm:$0xff]
        %v1558 = vld [vmem:[%s2 + $0x30] sm:$0xff]
        %v1559 = vld [vmem:[%s2 + $0x38] sm:$0xff]
        %v1560 = vld [vmem:[%s2 + $0x40] sm:$0xff]
        %v1561 = vld [vmem:[%s2 + $0x48] sm:$0xff]
        %v1562 = vld [vmem:[%s2 + $0x50] sm:$0xff]
        %v1563 = vld [vmem:[%s2 + $0x58] sm:$0xff]
        %v1564 = vld [vmem:[%s2 + $0x60] sm:$0xff]
        %v1565 = vld [vmem:[%s2 + $0x68] sm:$0xff]
        %v1566 = vld [vmem:[%s2 + $0x70] sm:$0xff]
        %v1567 = vld [vmem:[%s2 + $0x78] sm:$0xff]
        %v1568 = vld [vmem:[%s2 + $0x80] sm:$0xff]
        %v1569 = vld [vmem:[%s2 + $0x88] sm:$0xff]
        %v1570 = vld [vmem:[%s2 + $0x90] sm:$0xff]
        %v1571 = vld [vmem:[%s2 + $0x98] sm:$0xff]
        %vm1572 = vcmask 261120
        %v1574 = vsel %vm1572, %v1234, 0
        %v1577 = vsel %vm1572, %v1239, 0
        %v1580 = vsel %vm1572, %v1244, 0
        %v1583 = vsel %vm1572, %v1249, 0
        %v1586 = vsel %vm1572, %v1254, 0
        %v1589 = vsel %vm1572, %v1259, 0
        %v1592 = vsel %vm1572, %v1264, 0
        %v1595 = vsel %vm1572, %v1269, 0
        %v1598 = vsel %vm1572, %v1274, 0
        %v1601 = vsel %vm1572, %v1279, 0
        %v1604 = vsel %vm1572, %v1284, 0
        %v1607 = vsel %vm1572, %v1289, 0
        %v1610 = vsel %vm1572, %v1294, 0
        %v1613 = vsel %vm1572, %v1299, 0
        %v1616 = vsel %vm1572, %v1304, 0
        %v1619 = vsel %vm1572, %v1309, 0
        %1621 = vmatprep.subr.mxu0 0.0
        %1622 = vmatpush1.msra.mxu0 0.0
        %1623 = vmatprep.subr.mxu0 0.0
        %1624 = vmatpush1.msra.mxu0 0.0
        %1625 = vmatprep.subr.mxu0 0.0
        %1626 = vmatpush1.msra.mxu0 0.0
        %1627 = vmatprep.subr.mxu0 0.0
        %1628 = vmatpush1.msra.mxu0 0.0
        %1629 = vmatprep.subr.mxu0 0.0
        %1630 = vmatpush1.msra.mxu0 0.0
        %1631 = vmatprep.subr.mxu0 0.0
        %1632 = vmatpush1.msra.mxu0 0.0
        %1633 = vmatprep.subr.mxu0 0.0
        %1634 = vmatpush1.msra.mxu0 0.0
        %1635 = vmatprep.subr.mxu0 0.0
        %1636 = vmatpush1.msra.mxu0 0.0
        %1637 = vmatprep.subr.mxu0 0.0
        %1638 = vmatpush1.msra.mxu0 0.0
        %1639 = vmatprep.subr.mxu0 0.0
        %1640 = vmatpush1.msra.mxu0 0.0
        %1641 = vmatprep.subr.mxu0 0.0
        %1642 = vmatpush1.msra.mxu0 0.0
        %1643 = vmatprep.subr.mxu0 0.0
        %1644 = vmatpush1.msra.mxu0 0.0
        %1645 = vmatprep.subr.mxu0 0.0
        %1646 = vmatpush1.msra.mxu0 %v1559
        %1647 = vmatprep.subr.mxu0 0.0
        %1648 = vmatpush1.msra.mxu0 %v1558
        %1649 = vmatprep.subr.mxu0 0.0
        %1650 = vmatpush1.msra.mxu0 %v1557
        %1651 = vmatprep.subr.mxu0 0.0
        %1652 = vmatpush1.msra.mxu0 %v1556
        %1653 = vmatprep.subr.mxu0 0.0
        %1654 = vmatpush2.msra.mxu0 0.0
        %1655 = vmatprep.subr.mxu0 0.0
        %1656 = vmatpush2.msra.mxu0 0.0
        %1657 = vmatprep.subr.mxu0 0.0
        %1658 = vmatpush2.msra.mxu0 0.0
        %1659 = vmatprep.subr.mxu0 0.0
        %1660 = vmatpush2.msra.mxu0 0.0
        %1661 = vmatprep.subr.mxu0 0.0
        %1662 = vmatpush2.msra.mxu0 0.0
        %1663 = vmatprep.subr.mxu0 0.0
        %1664 = vmatpush2.msra.mxu0 0.0
        %1665 = vmatprep.subr.mxu0 0.0
        %1666 = vmatpush2.msra.mxu0 0.0
        %1667 = vmatprep.subr.mxu0 0.0
        %1668 = vmatpush2.msra.mxu0 0.0
        %1669 = vmatprep.subr.mxu0 0.0
        %1670 = vmatpush2.msra.mxu0 0.0
        %1671 = vmatprep.subr.mxu0 0.0
        %1672 = vmatpush2.msra.mxu0 0.0
        %1673 = vmatprep.subr.mxu0 0.0
        %1674 = vmatpush2.msra.mxu0 0.0
        %1675 = vmatprep.subr.mxu0 0.0
        %1676 = vmatpush2.msra.mxu0 0.0
        %1677 = vmatprep.subr.mxu0 0.0
        %1678 = vmatpush2.msra.mxu0 0.0
        %1679 = vmatprep.subr.mxu0 0.0
        %1680 = vmatpush2.msra.mxu0 0.0
        %1681 = vmatprep.subr.mxu0 0.0
        %1682 = vmatpush2.msra.mxu0 0.0
        %1683 = vmatprep.subr.mxu0 0.0
        %1684 = vmatpush2.msra.mxu0 0.0
        %1685 = vmatprep.mubr.f32.mxu0 0.0
        %1686 = vmatmul.mubr.f32.gmra.mxu0 %v1574
        %v1687 = vpop.f32.mrf.mxu0
        %v1688 = vadd.f32 0.0, %v1687
        %v1689 = vpop.f32.mrf.mxu0
        %1690 = vmatprep.mubr.f32.mxu0 0.0
        %1691 = vmatmul.mubr.f32.gmra.mxu0 %v1577
        %v1692 = vpop.f32.mrf.mxu0
        %v1693 = vadd.f32 0.0, %v1692
        %v1694 = vpop.f32.mrf.mxu0
        %1695 = vmatprep.mubr.f32.mxu0 0.0
        %1696 = vmatmul.mubr.f32.gmra.mxu0 %v1580
        %v1697 = vpop.f32.mrf.mxu0
        %v1698 = vadd.f32 0.0, %v1697
        %v1699 = vpop.f32.mrf.mxu0
        %1700 = vmatprep.mubr.f32.mxu0 0.0
        %1701 = vmatmul.mubr.f32.gmra.mxu0 %v1583
        %v1702 = vpop.f32.mrf.mxu0
        %v1703 = vadd.f32 0.0, %v1702
        %v1704 = vpop.f32.mrf.mxu0
        %1705 = vmatprep.mubr.f32.mxu0 0.0
        %1706 = vmatmul.mubr.f32.gmra.mxu0 %v1586
        %v1707 = vpop.f32.mrf.mxu0
        %v1708 = vadd.f32 0.0, %v1707
        %v1709 = vpop.f32.mrf.mxu0
        %1710 = vmatprep.mubr.f32.mxu0 0.0
        %1711 = vmatmul.mubr.f32.gmra.mxu0 %v1589
        %v1712 = vpop.f32.mrf.mxu0
        %v1713 = vadd.f32 0.0, %v1712
        %v1714 = vpop.f32.mrf.mxu0
        %1715 = vmatprep.mubr.f32.mxu0 0.0
        %1716 = vmatmul.mubr.f32.gmra.mxu0 %v1592
        %v1717 = vpop.f32.mrf.mxu0
        %v1718 = vadd.f32 0.0, %v1717
        %v1719 = vpop.f32.mrf.mxu0
        %1720 = vmatprep.mubr.f32.mxu0 0.0
        %1721 = vmatmul.mubr.f32.gmra.mxu0 %v1595
        %v1722 = vpop.f32.mrf.mxu0
        %v1723 = vadd.f32 0.0, %v1722
        %v1724 = vpop.f32.mrf.mxu0
        %1725 = vmatprep.mubr.f32.mxu0 0.0
        %1726 = vmatmul.mubr.f32.gmra.mxu0 %v1598
        %v1727 = vpop.f32.mrf.mxu0
        %v1728 = vadd.f32 0.0, %v1727
        %v1729 = vpop.f32.mrf.mxu0
        %1730 = vmatprep.mubr.f32.mxu0 0.0
        %1731 = vmatmul.mubr.f32.gmra.mxu0 %v1601
        %v1732 = vpop.f32.mrf.mxu0
        %v1733 = vadd.f32 0.0, %v1732
        %v1734 = vpop.f32.mrf.mxu0
        %1735 = vmatprep.mubr.f32.mxu0 0.0
        %1736 = vmatmul.mubr.f32.gmra.mxu0 %v1604
        %v1737 = vpop.f32.mrf.mxu0
        %v1738 = vadd.f32 0.0, %v1737
        %v1739 = vpop.f32.mrf.mxu0
        %1740 = vmatprep.mubr.f32.mxu0 0.0
        %1741 = vmatmul.mubr.f32.gmra.mxu0 %v1607
        %v1742 = vpop.f32.mrf.mxu0
        %v1743 = vadd.f32 0.0, %v1742
        %v1744 = vpop.f32.mrf.mxu0
        %1745 = vmatprep.mubr.f32.mxu0 0.0
        %1746 = vmatmul.mubr.f32.gmra.mxu0 %v1610
        %v1747 = vpop.f32.mrf.mxu0
        %v1748 = vadd.f32 0.0, %v1747
        %v1749 = vpop.f32.mrf.mxu0
        %1750 = vmatprep.mubr.f32.mxu0 0.0
        %1751 = vmatmul.mubr.f32.gmra.mxu0 %v1613
        %v1752 = vpop.f32.mrf.mxu0
        %v1753 = vadd.f32 0.0, %v1752
        %v1754 = vpop.f32.mrf.mxu0
        %1755 = vmatprep.mubr.f32.mxu0 0.0
        %1756 = vmatmul.mubr.f32.gmra.mxu0 %v1616
        %v1757 = vpop.f32.mrf.mxu0
        %v1758 = vadd.f32 0.0, %v1757
        %v1759 = vpop.f32.mrf.mxu0
        %1760 = vmatprep.mubr.f32.mxu0 0.0
        %1761 = vmatmul.mubr.f32.gmra.mxu0 %v1619
        %v1762 = vpop.f32.mrf.mxu0
        %v1763 = vadd.f32 0.0, %v1762
        %v1764 = vpop.f32.mrf.mxu0
        %1765 = vdwg.mxu0
        %v1767 = vsel %vm1572, %v1154, 0
        %v1770 = vsel %vm1572, %v1159, 0
        %v1773 = vsel %vm1572, %v1164, 0
        %v1776 = vsel %vm1572, %v1169, 0
        %v1779 = vsel %vm1572, %v1174, 0
        %v1782 = vsel %vm1572, %v1179, 0
        %v1785 = vsel %vm1572, %v1184, 0
        %v1788 = vsel %vm1572, %v1189, 0
        %v1791 = vsel %vm1572, %v1194, 0
        %v1794 = vsel %vm1572, %v1199, 0
        %v1797 = vsel %vm1572, %v1204, 0
        %v1800 = vsel %vm1572, %v1209, 0
        %v1803 = vsel %vm1572, %v1214, 0
        %v1806 = vsel %vm1572, %v1219, 0
        %v1809 = vsel %vm1572, %v1224, 0
        %v1812 = vsel %vm1572, %v1229, 0
        %1814 = vmatprep.subr.mxu0 0.0
        %1815 = vmatpush1.msra.mxu0 0.0
        %1816 = vmatprep.subr.mxu0 0.0
        %1817 = vmatpush1.msra.mxu0 0.0
        %1818 = vmatprep.subr.mxu0 0.0
        %1819 = vmatpush1.msra.mxu0 0.0
        %1820 = vmatprep.subr.mxu0 0.0
        %1821 = vmatpush1.msra.mxu0 0.0
        %1822 = vmatprep.subr.mxu0 0.0
        %1823 = vmatpush1.msra.mxu0 0.0
        %1824 = vmatprep.subr.mxu0 0.0
        %1825 = vmatpush1.msra.mxu0 0.0
        %1826 = vmatprep.subr.mxu0 0.0
        %1827 = vmatpush1.msra.mxu0 0.0
        %1828 = vmatprep.subr.mxu0 0.0
        %1829 = vmatpush1.msra.mxu0 0.0
        %1830 = vmatprep.subr.mxu0 0.0
        %1831 = vmatpush1.msra.mxu0 0.0
        %1832 = vmatprep.subr.mxu0 0.0
        %1833 = vmatpush1.msra.mxu0 0.0
        %1834 = vmatprep.subr.mxu0 0.0
        %1835 = vmatpush1.msra.mxu0 0.0
        %1836 = vmatprep.subr.mxu0 0.0
        %1837 = vmatpush1.msra.mxu0 0.0
        %1838 = vmatprep.subr.mxu0 0.0
        %1839 = vmatpush1.msra.mxu0 %v1555
        %1840 = vmatprep.subr.mxu0 0.0
        %1841 = vmatpush1.msra.mxu0 %v1554
        %1842 = vmatprep.subr.mxu0 0.0
        %1843 = vmatpush1.msra.mxu0 %v1553
        %1844 = vmatprep.subr.mxu0 0.0
        %1845 = vmatpush1.msra.mxu0 %v1552
        %1846 = vmatprep.subr.mxu0 0.0
        %1847 = vmatpush2.msra.mxu0 0.0
        %1848 = vmatprep.subr.mxu0 0.0
        %1849 = vmatpush2.msra.mxu0 0.0
        %1850 = vmatprep.subr.mxu0 0.0
        %1851 = vmatpush2.msra.mxu0 0.0
        %1852 = vmatprep.subr.mxu0 0.0
        %1853 = vmatpush2.msra.mxu0 0.0
        %1854 = vmatprep.subr.mxu0 0.0
        %1855 = vmatpush2.msra.mxu0 0.0
        %1856 = vmatprep.subr.mxu0 0.0
        %1857 = vmatpush2.msra.mxu0 0.0
        %1858 = vmatprep.subr.mxu0 0.0
        %1859 = vmatpush2.msra.mxu0 0.0
        %1860 = vmatprep.subr.mxu0 0.0
        %1861 = vmatpush2.msra.mxu0 0.0
        %1862 = vmatprep.subr.mxu0 0.0
        %1863 = vmatpush2.msra.mxu0 0.0
        %1864 = vmatprep.subr.mxu0 0.0
        %1865 = vmatpush2.msra.mxu0 0.0
        %1866 = vmatprep.subr.mxu0 0.0
        %1867 = vmatpush2.msra.mxu0 0.0
        %1868 = vmatprep.subr.mxu0 0.0
        %1869 = vmatpush2.msra.mxu0 0.0
        %1870 = vmatprep.subr.mxu0 0.0
        %1871 = vmatpush2.msra.mxu0 0.0
        %1872 = vmatprep.subr.mxu0 0.0
        %1873 = vmatpush2.msra.mxu0 0.0
        %1874 = vmatprep.subr.mxu0 0.0
        %1875 = vmatpush2.msra.mxu0 0.0
        %1876 = vmatprep.subr.mxu0 0.0
        %1877 = vmatpush2.msra.mxu0 0.0
        %1878 = vmatprep.mubr.f32.mxu0 0.0
        %1879 = vmatmul.mubr.f32.gmra.mxu0 %v1767
        %v1880 = vpop.f32.mrf.mxu0
        %v1881 = vadd.f32 %v1688, %v1880
        %v1882 = vpop.f32.mrf.mxu0
        %1883 = vmatprep.mubr.f32.mxu0 0.0
        %1884 = vmatmul.mubr.f32.gmra.mxu0 %v1770
        %v1885 = vpop.f32.mrf.mxu0
        %v1886 = vadd.f32 %v1693, %v1885
        %v1887 = vpop.f32.mrf.mxu0
        %1888 = vmatprep.mubr.f32.mxu0 0.0
        %1889 = vmatmul.mubr.f32.gmra.mxu0 %v1773
        %v1890 = vpop.f32.mrf.mxu0
        %v1891 = vadd.f32 %v1698, %v1890
        %v1892 = vpop.f32.mrf.mxu0
        %1893 = vmatprep.mubr.f32.mxu0 0.0
        %1894 = vmatmul.mubr.f32.gmra.mxu0 %v1776
        %v1895 = vpop.f32.mrf.mxu0
        %v1896 = vadd.f32 %v1703, %v1895
        %v1897 = vpop.f32.mrf.mxu0
        %1898 = vmatprep.mubr.f32.mxu0 0.0
        %1899 = vmatmul.mubr.f32.gmra.mxu0 %v1779
        %v1900 = vpop.f32.mrf.mxu0
        %v1901 = vadd.f32 %v1708, %v1900
        %v1902 = vpop.f32.mrf.mxu0
        %1903 = vmatprep.mubr.f32.mxu0 0.0
        %1904 = vmatmul.mubr.f32.gmra.mxu0 %v1782
        %v1905 = vpop.f32.mrf.mxu0
        %v1906 = vadd.f32 %v1713, %v1905
        %v1907 = vpop.f32.mrf.mxu0
        %1908 = vmatprep.mubr.f32.mxu0 0.0
        %1909 = vmatmul.mubr.f32.gmra.mxu0 %v1785
        %v1910 = vpop.f32.mrf.mxu0
        %v1911 = vadd.f32 %v1718, %v1910
        %v1912 = vpop.f32.mrf.mxu0
        %1913 = vmatprep.mubr.f32.mxu0 0.0
        %1914 = vmatmul.mubr.f32.gmra.mxu0 %v1788
        %v1915 = vpop.f32.mrf.mxu0
        %v1916 = vadd.f32 %v1723, %v1915
        %v1917 = vpop.f32.mrf.mxu0
        %1918 = vmatprep.mubr.f32.mxu0 0.0
        %1919 = vmatmul.mubr.f32.gmra.mxu0 %v1791
        %v1920 = vpop.f32.mrf.mxu0
        %v1921 = vadd.f32 %v1728, %v1920
        %v1922 = vpop.f32.mrf.mxu0
        %1923 = vmatprep.mubr.f32.mxu0 0.0
        %1924 = vmatmul.mubr.f32.gmra.mxu0 %v1794
        %v1925 = vpop.f32.mrf.mxu0
        %v1926 = vadd.f32 %v1733, %v1925
        %v1927 = vpop.f32.mrf.mxu0
        %1928 = vmatprep.mubr.f32.mxu0 0.0
        %1929 = vmatmul.mubr.f32.gmra.mxu0 %v1797
        %v1930 = vpop.f32.mrf.mxu0
        %v1931 = vadd.f32 %v1738, %v1930
        %v1932 = vpop.f32.mrf.mxu0
        %1933 = vmatprep.mubr.f32.mxu0 0.0
        %1934 = vmatmul.mubr.f32.gmra.mxu0 %v1800
        %v1935 = vpop.f32.mrf.mxu0
        %v1936 = vadd.f32 %v1743, %v1935
        %v1937 = vpop.f32.mrf.mxu0
        %1938 = vmatprep.mubr.f32.mxu0 0.0
        %1939 = vmatmul.mubr.f32.gmra.mxu0 %v1803
        %v1940 = vpop.f32.mrf.mxu0
        %v1941 = vadd.f32 %v1748, %v1940
        %v1942 = vpop.f32.mrf.mxu0
        %1943 = vmatprep.mubr.f32.mxu0 0.0
        %1944 = vmatmul.mubr.f32.gmra.mxu0 %v1806
        %v1945 = vpop.f32.mrf.mxu0
        %v1946 = vadd.f32 %v1753, %v1945
        %v1947 = vpop.f32.mrf.mxu0
        %1948 = vmatprep.mubr.f32.mxu0 0.0
        %1949 = vmatmul.mubr.f32.gmra.mxu0 %v1809
        %v1950 = vpop.f32.mrf.mxu0
        %v1951 = vadd.f32 %v1758, %v1950
        %v1952 = vpop.f32.mrf.mxu0
        %1953 = vmatprep.mubr.f32.mxu0 0.0
        %1954 = vmatmul.mubr.f32.gmra.mxu0 %v1812
        %v1955 = vpop.f32.mrf.mxu0
        %v1956 = vadd.f32 %v1763, %v1955
        %v1957 = vpop.f32.mrf.mxu0
        %1958 = vdwg.mxu0
        %v1960 = vsel %vm1572, %v1314, 0
        %v1963 = vsel %vm1572, %v1319, 0
        %v1966 = vsel %vm1572, %v1324, 0
        %v1969 = vsel %vm1572, %v1329, 0
        %v1972 = vsel %vm1572, %v1334, 0
        %v1975 = vsel %vm1572, %v1339, 0
        %v1978 = vsel %vm1572, %v1344, 0
        %v1981 = vsel %vm1572, %v1349, 0
        %v1984 = vsel %vm1572, %v1354, 0
        %v1987 = vsel %vm1572, %v1359, 0
        %v1990 = vsel %vm1572, %v1364, 0
        %v1993 = vsel %vm1572, %v1369, 0
        %v1996 = vsel %vm1572, %v1374, 0
        %v1999 = vsel %vm1572, %v1379, 0
        %v2002 = vsel %vm1572, %v1384, 0
        %v2005 = vsel %vm1572, %v1389, 0
        %2007 = vmatprep.subr.mxu0 0.0
        %2008 = vmatpush1.msra.mxu0 0.0
        %2009 = vmatprep.subr.mxu0 0.0
        %2010 = vmatpush1.msra.mxu0 0.0
        %2011 = vmatprep.subr.mxu0 0.0
        %2012 = vmatpush1.msra.mxu0 0.0
        %2013 = vmatprep.subr.mxu0 0.0
        %2014 = vmatpush1.msra.mxu0 0.0
        %2015 = vmatprep.subr.mxu0 0.0
        %2016 = vmatpush1.msra.mxu0 0.0
        %2017 = vmatprep.subr.mxu0 0.0
        %2018 = vmatpush1.msra.mxu0 0.0
        %2019 = vmatprep.subr.mxu0 0.0
        %2020 = vmatpush1.msra.mxu0 0.0
        %2021 = vmatprep.subr.mxu0 0.0
        %2022 = vmatpush1.msra.mxu0 0.0
        %2023 = vmatprep.subr.mxu0 0.0
        %2024 = vmatpush1.msra.mxu0 0.0
        %2025 = vmatprep.subr.mxu0 0.0
        %2026 = vmatpush1.msra.mxu0 0.0
        %2027 = vmatprep.subr.mxu0 0.0
        %2028 = vmatpush1.msra.mxu0 0.0
        %2029 = vmatprep.subr.mxu0 0.0
        %2030 = vmatpush1.msra.mxu0 0.0
        %2031 = vmatprep.subr.mxu0 0.0
        %2032 = vmatpush1.msra.mxu0 %v1563
        %2033 = vmatprep.subr.mxu0 0.0
        %2034 = vmatpush1.msra.mxu0 %v1562
        %2035 = vmatprep.subr.mxu0 0.0
        %2036 = vmatpush1.msra.mxu0 %v1561
        %2037 = vmatprep.subr.mxu0 0.0
        %2038 = vmatpush1.msra.mxu0 %v1560
        %2039 = vmatprep.subr.mxu0 0.0
        %2040 = vmatpush2.msra.mxu0 0.0
        %2041 = vmatprep.subr.mxu0 0.0
        %2042 = vmatpush2.msra.mxu0 0.0
        %2043 = vmatprep.subr.mxu0 0.0
        %2044 = vmatpush2.msra.mxu0 0.0
        %2045 = vmatprep.subr.mxu0 0.0
        %2046 = vmatpush2.msra.mxu0 0.0
        %2047 = vmatprep.subr.mxu0 0.0
        %2048 = vmatpush2.msra.mxu0 0.0
        %2049 = vmatprep.subr.mxu0 0.0
        %2050 = vmatpush2.msra.mxu0 0.0
        %2051 = vmatprep.subr.mxu0 0.0
        %2052 = vmatpush2.msra.mxu0 0.0
        %2053 = vmatprep.subr.mxu0 0.0
        %2054 = vmatpush2.msra.mxu0 0.0
        %2055 = vmatprep.subr.mxu0 0.0
        %2056 = vmatpush2.msra.mxu0 0.0
        %2057 = vmatprep.subr.mxu0 0.0
        %2058 = vmatpush2.msra.mxu0 0.0
        %2059 = vmatprep.subr.mxu0 0.0
        %2060 = vmatpush2.msra.mxu0 0.0
        %2061 = vmatprep.subr.mxu0 0.0
        %2062 = vmatpush2.msra.mxu0 0.0
        %2063 = vmatprep.subr.mxu0 0.0
        %2064 = vmatpush2.msra.mxu0 0.0
        %2065 = vmatprep.subr.mxu0 0.0
        %2066 = vmatpush2.msra.mxu0 0.0
        %2067 = vmatprep.subr.mxu0 0.0
        %2068 = vmatpush2.msra.mxu0 0.0
        %2069 = vmatprep.subr.mxu0 0.0
        %2070 = vmatpush2.msra.mxu0 0.0
        %2071 = vmatprep.mubr.f32.mxu0 0.0
        %2072 = vmatmul.mubr.f32.gmra.mxu0 %v1960
        %v2073 = vpop.f32.mrf.mxu0
        %v2074 = vadd.f32 0.0, %v2073
        %v2075 = vpop.f32.mrf.mxu0
        %2076 = vmatprep.mubr.f32.mxu0 0.0
        %2077 = vmatmul.mubr.f32.gmra.mxu0 %v1963
        %v2078 = vpop.f32.mrf.mxu0
        %v2079 = vadd.f32 0.0, %v2078
        %v2080 = vpop.f32.mrf.mxu0
        %2081 = vmatprep.mubr.f32.mxu0 0.0
        %2082 = vmatmul.mubr.f32.gmra.mxu0 %v1966
        %v2083 = vpop.f32.mrf.mxu0
        %v2084 = vadd.f32 0.0, %v2083
        %v2085 = vpop.f32.mrf.mxu0
        %2086 = vmatprep.mubr.f32.mxu0 0.0
        %2087 = vmatmul.mubr.f32.gmra.mxu0 %v1969
        %v2088 = vpop.f32.mrf.mxu0
        %v2089 = vadd.f32 0.0, %v2088
        %v2090 = vpop.f32.mrf.mxu0
        %2091 = vmatprep.mubr.f32.mxu0 0.0
        %2092 = vmatmul.mubr.f32.gmra.mxu0 %v1972
        %v2093 = vpop.f32.mrf.mxu0
        %v2094 = vadd.f32 0.0, %v2093
        %v2095 = vpop.f32.mrf.mxu0
        %2096 = vmatprep.mubr.f32.mxu0 0.0
        %2097 = vmatmul.mubr.f32.gmra.mxu0 %v1975
        %v2098 = vpop.f32.mrf.mxu0
        %v2099 = vadd.f32 0.0, %v2098
        %v2100 = vpop.f32.mrf.mxu0
        %2101 = vmatprep.mubr.f32.mxu0 0.0
        %2102 = vmatmul.mubr.f32.gmra.mxu0 %v1978
        %v2103 = vpop.f32.mrf.mxu0
        %v2104 = vadd.f32 0.0, %v2103
        %v2105 = vpop.f32.mrf.mxu0
        %2106 = vmatprep.mubr.f32.mxu0 0.0
        %2107 = vmatmul.mubr.f32.gmra.mxu0 %v1981
        %v2108 = vpop.f32.mrf.mxu0
        %v2109 = vadd.f32 0.0, %v2108
        %v2110 = vpop.f32.mrf.mxu0
        %2111 = vmatprep.mubr.f32.mxu0 0.0
        %2112 = vmatmul.mubr.f32.gmra.mxu0 %v1984
        %v2113 = vpop.f32.mrf.mxu0
        %v2114 = vadd.f32 0.0, %v2113
        %v2115 = vpop.f32.mrf.mxu0
        %2116 = vmatprep.mubr.f32.mxu0 0.0
        %2117 = vmatmul.mubr.f32.gmra.mxu0 %v1987
        %v2118 = vpop.f32.mrf.mxu0
        %v2119 = vadd.f32 0.0, %v2118
        %v2120 = vpop.f32.mrf.mxu0
        %2121 = vmatprep.mubr.f32.mxu0 0.0
        %2122 = vmatmul.mubr.f32.gmra.mxu0 %v1990
        %v2123 = vpop.f32.mrf.mxu0
        %v2124 = vadd.f32 0.0, %v2123
        %v2125 = vpop.f32.mrf.mxu0
        %2126 = vmatprep.mubr.f32.mxu0 0.0
        %2127 = vmatmul.mubr.f32.gmra.mxu0 %v1993
        %v2128 = vpop.f32.mrf.mxu0
        %v2129 = vadd.f32 0.0, %v2128
        %v2130 = vpop.f32.mrf.mxu0
        %2131 = vmatprep.mubr.f32.mxu0 0.0
        %2132 = vmatmul.mubr.f32.gmra.mxu0 %v1996
        %v2133 = vpop.f32.mrf.mxu0
        %v2134 = vadd.f32 0.0, %v2133
        %v2135 = vpop.f32.mrf.mxu0
        %2136 = vmatprep.mubr.f32.mxu0 0.0
        %2137 = vmatmul.mubr.f32.gmra.mxu0 %v1999
        %v2138 = vpop.f32.mrf.mxu0
        %v2139 = vadd.f32 0.0, %v2138
        %v2140 = vpop.f32.mrf.mxu0
        %2141 = vmatprep.mubr.f32.mxu0 0.0
        %2142 = vmatmul.mubr.f32.gmra.mxu0 %v2002
        %v2143 = vpop.f32.mrf.mxu0
        %v2144 = vadd.f32 0.0, %v2143
        %v2145 = vpop.f32.mrf.mxu0
        %2146 = vmatprep.mubr.f32.mxu0 0.0
        %2147 = vmatmul.mubr.f32.gmra.mxu0 %v2005
        %v2148 = vpop.f32.mrf.mxu0
        %v2149 = vadd.f32 0.0, %v2148
        %v2150 = vpop.f32.mrf.mxu0
        %2151 = vdwg.mxu0
        %v2152 = vadd.f32 %v1881, %v2074
        %v2153 = vadd.f32 %v1886, %v2079
        %v2154 = vadd.f32 %v1891, %v2084
        %v2155 = vadd.f32 %v1896, %v2089
        %v2156 = vadd.f32 %v1901, %v2094
        %v2157 = vadd.f32 %v1906, %v2099
        %v2158 = vadd.f32 %v1911, %v2104
        %v2159 = vadd.f32 %v1916, %v2109
        %v2160 = vadd.f32 %v1921, %v2114
        %v2161 = vadd.f32 %v1926, %v2119
        %v2162 = vadd.f32 %v1931, %v2124
        %v2163 = vadd.f32 %v1936, %v2129
        %v2164 = vadd.f32 %v1941, %v2134
        %v2165 = vadd.f32 %v1946, %v2139
        %v2166 = vadd.f32 %v1951, %v2144
        %v2167 = vadd.f32 %v1956, %v2149
        %v2169 = vsel %vm1572, %v1394, 0
        %v2172 = vsel %vm1572, %v1399, 0
        %v2175 = vsel %vm1572, %v1404, 0
        %v2178 = vsel %vm1572, %v1409, 0
        %v2181 = vsel %vm1572, %v1414, 0
        %v2184 = vsel %vm1572, %v1419, 0
        %v2187 = vsel %vm1572, %v1424, 0
        %v2190 = vsel %vm1572, %v1429, 0
        %v2193 = vsel %vm1572, %v1434, 0
        %v2196 = vsel %vm1572, %v1439, 0
        %v2199 = vsel %vm1572, %v1444, 0
        %v2202 = vsel %vm1572, %v1449, 0
        %v2205 = vsel %vm1572, %v1454, 0
        %v2208 = vsel %vm1572, %v1459, 0
        %v2211 = vsel %vm1572, %v1464, 0
        %v2214 = vsel %vm1572, %v1469, 0
        %2216 = vmatprep.subr.mxu0 0.0
        %2217 = vmatpush1.msra.mxu0 0.0
        %2218 = vmatprep.subr.mxu0 0.0
        %2219 = vmatpush1.msra.mxu0 0.0
        %2220 = vmatprep.subr.mxu0 0.0
        %2221 = vmatpush1.msra.mxu0 0.0
        %2222 = vmatprep.subr.mxu0 0.0
        %2223 = vmatpush1.msra.mxu0 0.0
        %2224 = vmatprep.subr.mxu0 0.0
        %2225 = vmatpush1.msra.mxu0 0.0
        %2226 = vmatprep.subr.mxu0 0.0
        %2227 = vmatpush1.msra.mxu0 0.0
        %2228 = vmatprep.subr.mxu0 0.0
        %2229 = vmatpush1.msra.mxu0 0.0
        %2230 = vmatprep.subr.mxu0 0.0
        %2231 = vmatpush1.msra.mxu0 0.0
        %2232 = vmatprep.subr.mxu0 0.0
        %2233 = vmatpush1.msra.mxu0 0.0
        %2234 = vmatprep.subr.mxu0 0.0
        %2235 = vmatpush1.msra.mxu0 0.0
        %2236 = vmatprep.subr.mxu0 0.0
        %2237 = vmatpush1.msra.mxu0 0.0
        %2238 = vmatprep.subr.mxu0 0.0
        %2239 = vmatpush1.msra.mxu0 0.0
        %2240 = vmatprep.subr.mxu0 0.0
        %2241 = vmatpush1.msra.mxu0 %v1567
        %2242 = vmatprep.subr.mxu0 0.0
        %2243 = vmatpush1.msra.mxu0 %v1566
        %2244 = vmatprep.subr.mxu0 0.0
        %2245 = vmatpush1.msra.mxu0 %v1565
        %2246 = vmatprep.subr.mxu0 0.0
        %2247 = vmatpush1.msra.mxu0 %v1564
        %2248 = vmatprep.subr.mxu0 0.0
        %2249 = vmatpush2.msra.mxu0 0.0
        %2250 = vmatprep.subr.mxu0 0.0
        %2251 = vmatpush2.msra.mxu0 0.0
        %2252 = vmatprep.subr.mxu0 0.0
        %2253 = vmatpush2.msra.mxu0 0.0
        %2254 = vmatprep.subr.mxu0 0.0
        %2255 = vmatpush2.msra.mxu0 0.0
        %2256 = vmatprep.subr.mxu0 0.0
        %2257 = vmatpush2.msra.mxu0 0.0
        %2258 = vmatprep.subr.mxu0 0.0
        %2259 = vmatpush2.msra.mxu0 0.0
        %2260 = vmatprep.subr.mxu0 0.0
        %2261 = vmatpush2.msra.mxu0 0.0
        %2262 = vmatprep.subr.mxu0 0.0
        %2263 = vmatpush2.msra.mxu0 0.0
        %2264 = vmatprep.subr.mxu0 0.0
        %2265 = vmatpush2.msra.mxu0 0.0
        %2266 = vmatprep.subr.mxu0 0.0
        %2267 = vmatpush2.msra.mxu0 0.0
        %2268 = vmatprep.subr.mxu0 0.0
        %2269 = vmatpush2.msra.mxu0 0.0
        %2270 = vmatprep.subr.mxu0 0.0
        %2271 = vmatpush2.msra.mxu0 0.0
        %2272 = vmatprep.subr.mxu0 0.0
        %2273 = vmatpush2.msra.mxu0 0.0
        %2274 = vmatprep.subr.mxu0 0.0
        %2275 = vmatpush2.msra.mxu0 0.0
        %2276 = vmatprep.subr.mxu0 0.0
        %2277 = vmatpush2.msra.mxu0 0.0
        %2278 = vmatprep.subr.mxu0 0.0
        %2279 = vmatpush2.msra.mxu0 0.0
        %2280 = vmatprep.mubr.f32.mxu0 0.0
        %2281 = vmatmul.mubr.f32.gmra.mxu0 %v2169
        %v2282 = vpop.f32.mrf.mxu0
        %v2283 = vadd.f32 0.0, %v2282
        %v2284 = vpop.f32.mrf.mxu0
        %2285 = vmatprep.mubr.f32.mxu0 0.0
        %2286 = vmatmul.mubr.f32.gmra.mxu0 %v2172
        %v2287 = vpop.f32.mrf.mxu0
        %v2288 = vadd.f32 0.0, %v2287
        %v2289 = vpop.f32.mrf.mxu0
        %2290 = vmatprep.mubr.f32.mxu0 0.0
        %2291 = vmatmul.mubr.f32.gmra.mxu0 %v2175
        %v2292 = vpop.f32.mrf.mxu0
        %v2293 = vadd.f32 0.0, %v2292
        %v2294 = vpop.f32.mrf.mxu0
        %2295 = vmatprep.mubr.f32.mxu0 0.0
        %2296 = vmatmul.mubr.f32.gmra.mxu0 %v2178
        %v2297 = vpop.f32.mrf.mxu0
        %v2298 = vadd.f32 0.0, %v2297
        %v2299 = vpop.f32.mrf.mxu0
        %2300 = vmatprep.mubr.f32.mxu0 0.0
        %2301 = vmatmul.mubr.f32.gmra.mxu0 %v2181
        %v2302 = vpop.f32.mrf.mxu0
        %v2303 = vadd.f32 0.0, %v2302
        %v2304 = vpop.f32.mrf.mxu0
        %2305 = vmatprep.mubr.f32.mxu0 0.0
        %2306 = vmatmul.mubr.f32.gmra.mxu0 %v2184
        %v2307 = vpop.f32.mrf.mxu0
        %v2308 = vadd.f32 0.0, %v2307
        %v2309 = vpop.f32.mrf.mxu0
        %2310 = vmatprep.mubr.f32.mxu0 0.0
        %2311 = vmatmul.mubr.f32.gmra.mxu0 %v2187
        %v2312 = vpop.f32.mrf.mxu0
        %v2313 = vadd.f32 0.0, %v2312
        %v2314 = vpop.f32.mrf.mxu0
        %2315 = vmatprep.mubr.f32.mxu0 0.0
        %2316 = vmatmul.mubr.f32.gmra.mxu0 %v2190
        %v2317 = vpop.f32.mrf.mxu0
        %v2318 = vadd.f32 0.0, %v2317
        %v2319 = vpop.f32.mrf.mxu0
        %2320 = vmatprep.mubr.f32.mxu0 0.0
        %2321 = vmatmul.mubr.f32.gmra.mxu0 %v2193
        %v2322 = vpop.f32.mrf.mxu0
        %v2323 = vadd.f32 0.0, %v2322
        %v2324 = vpop.f32.mrf.mxu0
        %2325 = vmatprep.mubr.f32.mxu0 0.0
        %2326 = vmatmul.mubr.f32.gmra.mxu0 %v2196
        %v2327 = vpop.f32.mrf.mxu0
        %v2328 = vadd.f32 0.0, %v2327
        %v2329 = vpop.f32.mrf.mxu0
        %2330 = vmatprep.mubr.f32.mxu0 0.0
        %2331 = vmatmul.mubr.f32.gmra.mxu0 %v2199
        %v2332 = vpop.f32.mrf.mxu0
        %v2333 = vadd.f32 0.0, %v2332
        %v2334 = vpop.f32.mrf.mxu0
        %2335 = vmatprep.mubr.f32.mxu0 0.0
        %2336 = vmatmul.mubr.f32.gmra.mxu0 %v2202
        %v2337 = vpop.f32.mrf.mxu0
        %v2338 = vadd.f32 0.0, %v2337
        %v2339 = vpop.f32.mrf.mxu0
        %2340 = vmatprep.mubr.f32.mxu0 0.0
        %2341 = vmatmul.mubr.f32.gmra.mxu0 %v2205
        %v2342 = vpop.f32.mrf.mxu0
        %v2343 = vadd.f32 0.0, %v2342
        %v2344 = vpop.f32.mrf.mxu0
        %2345 = vmatprep.mubr.f32.mxu0 0.0
        %2346 = vmatmul.mubr.f32.gmra.mxu0 %v2208
        %v2347 = vpop.f32.mrf.mxu0
        %v2348 = vadd.f32 0.0, %v2347
        %v2349 = vpop.f32.mrf.mxu0
        %2350 = vmatprep.mubr.f32.mxu0 0.0
        %2351 = vmatmul.mubr.f32.gmra.mxu0 %v2211
        %v2352 = vpop.f32.mrf.mxu0
        %v2353 = vadd.f32 0.0, %v2352
        %v2354 = vpop.f32.mrf.mxu0
        %2355 = vmatprep.mubr.f32.mxu0 0.0
        %2356 = vmatmul.mubr.f32.gmra.mxu0 %v2214
        %v2357 = vpop.f32.mrf.mxu0
        %v2358 = vadd.f32 0.0, %v2357
        %v2359 = vpop.f32.mrf.mxu0
        %2360 = vdwg.mxu0
        %v2361 = vadd.f32 %v2152, %v2283
        %v2362 = vadd.f32 %v2153, %v2288
        %v2363 = vadd.f32 %v2154, %v2293
        %v2364 = vadd.f32 %v2155, %v2298
        %v2365 = vadd.f32 %v2156, %v2303
        %v2366 = vadd.f32 %v2157, %v2308
        %v2367 = vadd.f32 %v2158, %v2313
        %v2368 = vadd.f32 %v2159, %v2318
        %v2369 = vadd.f32 %v2160, %v2323
        %v2370 = vadd.f32 %v2161, %v2328
        %v2371 = vadd.f32 %v2162, %v2333
        %v2372 = vadd.f32 %v2163, %v2338
        %v2373 = vadd.f32 %v2164, %v2343
        %v2374 = vadd.f32 %v2165, %v2348
        %v2375 = vadd.f32 %v2166, %v2353
        %v2376 = vadd.f32 %v2167, %v2358
        %v2378 = vsel %vm1572, %v1474, 0
        %v2381 = vsel %vm1572, %v1479, 0
        %v2384 = vsel %vm1572, %v1484, 0
        %v2387 = vsel %vm1572, %v1489, 0
        %v2390 = vsel %vm1572, %v1494, 0
        %v2393 = vsel %vm1572, %v1499, 0
        %v2396 = vsel %vm1572, %v1504, 0
        %v2399 = vsel %vm1572, %v1509, 0
        %v2402 = vsel %vm1572, %v1514, 0
        %v2405 = vsel %vm1572, %v1519, 0
        %v2408 = vsel %vm1572, %v1524, 0
        %v2411 = vsel %vm1572, %v1529, 0
        %v2414 = vsel %vm1572, %v1534, 0
        %v2417 = vsel %vm1572, %v1539, 0
        %v2420 = vsel %vm1572, %v1544, 0
        %v2423 = vsel %vm1572, %v1549, 0
        %2425 = vmatprep.subr.mxu0 0.0
        %2426 = vmatpush1.msra.mxu0 0.0
        %2427 = vmatprep.subr.mxu0 0.0
        %2428 = vmatpush1.msra.mxu0 0.0
        %2429 = vmatprep.subr.mxu0 0.0
        %2430 = vmatpush1.msra.mxu0 0.0
        %2431 = vmatprep.subr.mxu0 0.0
        %2432 = vmatpush1.msra.mxu0 0.0
        %2433 = vmatprep.subr.mxu0 0.0
        %2434 = vmatpush1.msra.mxu0 0.0
        %2435 = vmatprep.subr.mxu0 0.0
        %2436 = vmatpush1.msra.mxu0 0.0
        %2437 = vmatprep.subr.mxu0 0.0
        %2438 = vmatpush1.msra.mxu0 0.0
        %2439 = vmatprep.subr.mxu0 0.0
        %2440 = vmatpush1.msra.mxu0 0.0
        %2441 = vmatprep.subr.mxu0 0.0
        %2442 = vmatpush1.msra.mxu0 0.0
        %2443 = vmatprep.subr.mxu0 0.0
        %2444 = vmatpush1.msra.mxu0 0.0
        %2445 = vmatprep.subr.mxu0 0.0
        %2446 = vmatpush1.msra.mxu0 0.0
        %2447 = vmatprep.subr.mxu0 0.0
        %2448 = vmatpush1.msra.mxu0 0.0
        %2449 = vmatprep.subr.mxu0 0.0
        %2450 = vmatpush1.msra.mxu0 %v1571
        %2451 = vmatprep.subr.mxu0 0.0
        %2452 = vmatpush1.msra.mxu0 %v1570
        %2453 = vmatprep.subr.mxu0 0.0
        %2454 = vmatpush1.msra.mxu0 %v1569
        %2455 = vmatprep.subr.mxu0 0.0
        %2456 = vmatpush1.msra.mxu0 %v1568
        %2457 = vmatprep.subr.mxu0 0.0
        %2458 = vmatpush2.msra.mxu0 0.0
        %2459 = vmatprep.subr.mxu0 0.0
        %2460 = vmatpush2.msra.mxu0 0.0
        %2461 = vmatprep.subr.mxu0 0.0
        %2462 = vmatpush2.msra.mxu0 0.0
        %2463 = vmatprep.subr.mxu0 0.0
        %2464 = vmatpush2.msra.mxu0 0.0
        %2465 = vmatprep.subr.mxu0 0.0
        %2466 = vmatpush2.msra.mxu0 0.0
        %2467 = vmatprep.subr.mxu0 0.0
        %2468 = vmatpush2.msra.mxu0 0.0
        %2469 = vmatprep.subr.mxu0 0.0
        %2470 = vmatpush2.msra.mxu0 0.0
        %2471 = vmatprep.subr.mxu0 0.0
        %2472 = vmatpush2.msra.mxu0 0.0
        %2473 = vmatprep.subr.mxu0 0.0
        %2474 = vmatpush2.msra.mxu0 0.0
        %2475 = vmatprep.subr.mxu0 0.0
        %2476 = vmatpush2.msra.mxu0 0.0
        %2477 = vmatprep.subr.mxu0 0.0
        %2478 = vmatpush2.msra.mxu0 0.0
        %2479 = vmatprep.subr.mxu0 0.0
        %2480 = vmatpush2.msra.mxu0 0.0
        %2481 = vmatprep.subr.mxu0 0.0
        %2482 = vmatpush2.msra.mxu0 0.0
        %2483 = vmatprep.subr.mxu0 0.0
        %2484 = vmatpush2.msra.mxu0 0.0
        %2485 = vmatprep.subr.mxu0 0.0
        %2486 = vmatpush2.msra.mxu0 0.0
        %2487 = vmatprep.subr.mxu0 0.0
        %2488 = vmatpush2.msra.mxu0 0.0
        %2489 = vmatprep.mubr.f32.mxu0 0.0
        %2490 = vmatmul.mubr.f32.gmra.mxu0 %v2378
        %v2491 = vpop.f32.mrf.mxu0
        %v2492 = vadd.f32 0.0, %v2491
        %v2493 = vpop.f32.mrf.mxu0
        %2494 = vmatprep.mubr.f32.mxu0 0.0
        %2495 = vmatmul.mubr.f32.gmra.mxu0 %v2381
        %v2496 = vpop.f32.mrf.mxu0
        %v2497 = vadd.f32 0.0, %v2496
        %v2498 = vpop.f32.mrf.mxu0
        %2499 = vmatprep.mubr.f32.mxu0 0.0
        %2500 = vmatmul.mubr.f32.gmra.mxu0 %v2384
        %v2501 = vpop.f32.mrf.mxu0
        %v2502 = vadd.f32 0.0, %v2501
        %v2503 = vpop.f32.mrf.mxu0
        %2504 = vmatprep.mubr.f32.mxu0 0.0
        %2505 = vmatmul.mubr.f32.gmra.mxu0 %v2387
        %v2506 = vpop.f32.mrf.mxu0
        %v2507 = vadd.f32 0.0, %v2506
        %v2508 = vpop.f32.mrf.mxu0
        %2509 = vmatprep.mubr.f32.mxu0 0.0
        %2510 = vmatmul.mubr.f32.gmra.mxu0 %v2390
        %v2511 = vpop.f32.mrf.mxu0
        %v2512 = vadd.f32 0.0, %v2511
        %v2513 = vpop.f32.mrf.mxu0
        %2514 = vmatprep.mubr.f32.mxu0 0.0
        %2515 = vmatmul.mubr.f32.gmra.mxu0 %v2393
        %v2516 = vpop.f32.mrf.mxu0
        %v2517 = vadd.f32 0.0, %v2516
        %v2518 = vpop.f32.mrf.mxu0
        %2519 = vmatprep.mubr.f32.mxu0 0.0
        %2520 = vmatmul.mubr.f32.gmra.mxu0 %v2396
        %v2521 = vpop.f32.mrf.mxu0
        %v2522 = vadd.f32 0.0, %v2521
        %v2523 = vpop.f32.mrf.mxu0
        %2524 = vmatprep.mubr.f32.mxu0 0.0
        %2525 = vmatmul.mubr.f32.gmra.mxu0 %v2399
        %v2526 = vpop.f32.mrf.mxu0
        %v2527 = vadd.f32 0.0, %v2526
        %v2528 = vpop.f32.mrf.mxu0
        %2529 = vmatprep.mubr.f32.mxu0 0.0
        %2530 = vmatmul.mubr.f32.gmra.mxu0 %v2402
        %v2531 = vpop.f32.mrf.mxu0
        %v2532 = vadd.f32 0.0, %v2531
        %v2533 = vpop.f32.mrf.mxu0
        %2534 = vmatprep.mubr.f32.mxu0 0.0
        %2535 = vmatmul.mubr.f32.gmra.mxu0 %v2405
        %v2536 = vpop.f32.mrf.mxu0
        %v2537 = vadd.f32 0.0, %v2536
        %v2538 = vpop.f32.mrf.mxu0
        %2539 = vmatprep.mubr.f32.mxu0 0.0
        %2540 = vmatmul.mubr.f32.gmra.mxu0 %v2408
        %v2541 = vpop.f32.mrf.mxu0
        %v2542 = vadd.f32 0.0, %v2541
        %v2543 = vpop.f32.mrf.mxu0
        %2544 = vmatprep.mubr.f32.mxu0 0.0
        %2545 = vmatmul.mubr.f32.gmra.mxu0 %v2411
        %v2546 = vpop.f32.mrf.mxu0
        %v2547 = vadd.f32 0.0, %v2546
        %v2548 = vpop.f32.mrf.mxu0
        %2549 = vmatprep.mubr.f32.mxu0 0.0
        %2550 = vmatmul.mubr.f32.gmra.mxu0 %v2414
        %v2551 = vpop.f32.mrf.mxu0
        %v2552 = vadd.f32 0.0, %v2551
        %v2553 = vpop.f32.mrf.mxu0
        %2554 = vmatprep.mubr.f32.mxu0 0.0
        %2555 = vmatmul.mubr.f32.gmra.mxu0 %v2417
        %v2556 = vpop.f32.mrf.mxu0
        %v2557 = vadd.f32 0.0, %v2556
        %v2558 = vpop.f32.mrf.mxu0
        %2559 = vmatprep.mubr.f32.mxu0 0.0
        %2560 = vmatmul.mubr.f32.gmra.mxu0 %v2420
        %v2561 = vpop.f32.mrf.mxu0
        %v2562 = vadd.f32 0.0, %v2561
        %v2563 = vpop.f32.mrf.mxu0
        %2564 = vmatprep.mubr.f32.mxu0 0.0
        %2565 = vmatmul.mubr.f32.gmra.mxu0 %v2423
        %v2566 = vpop.f32.mrf.mxu0
        %v2567 = vadd.f32 0.0, %v2566
        %v2568 = vpop.f32.mrf.mxu0
        %2569 = vdwg.mxu0
        %v2570 = vadd.f32 %v2361, %v2492
        %v2571 = vadd.f32 %v2362, %v2497
        %v2572 = vadd.f32 %v2363, %v2502
        %v2573 = vadd.f32 %v2364, %v2507
        %v2574 = vadd.f32 %v2365, %v2512
        %v2575 = vadd.f32 %v2366, %v2517
        %v2576 = vadd.f32 %v2367, %v2522
        %v2577 = vadd.f32 %v2368, %v2527
        %v2578 = vadd.f32 %v2369, %v2532
        %v2579 = vadd.f32 %v2370, %v2537
        %v2580 = vadd.f32 %v2371, %v2542
        %v2581 = vadd.f32 %v2372, %v2547
        %v2582 = vadd.f32 %v2373, %v2552
        %v2583 = vadd.f32 %v2374, %v2557
        %v2584 = vadd.f32 %v2375, %v2562
        %v2585 = vadd.f32 %v2376, %v2567
        %v2586 = vld [vmem:[%s3] sm:$0x1]
        %v2588 = vlaneseq
        %v2589 = vshrl.u32 %v2588, 7
        %v2590 = vsub.s32 0, %v2589
        %v2591 = vrot.slane %v2586, %v2590
        %v2593 = vadd.f32 %v2570, %v2591
        %v2594 = vadd.f32 %v2571, %v2591
        %v2595 = vadd.f32 %v2572, %v2591
        %v2596 = vadd.f32 %v2573, %v2591
        %v2597 = vadd.f32 %v2574, %v2591
        %v2598 = vadd.f32 %v2575, %v2591
        %v2599 = vadd.f32 %v2576, %v2591
        %v2600 = vadd.f32 %v2577, %v2591
        %v2601 = vadd.f32 %v2578, %v2591
        %v2602 = vadd.f32 %v2579, %v2591
        %v2603 = vadd.f32 %v2580, %v2591
        %v2604 = vadd.f32 %v2581, %v2591
        %v2605 = vadd.f32 %v2582, %v2591
        %v2606 = vadd.f32 %v2583, %v2591
        %v2607 = vadd.f32 %v2584, %v2591
        %v2608 = vadd.f32 %v2585, %v2591
        %v2609 = vmax.f32 %v2593, 0.0
        %v2610 = vmax.f32 %v2594, 0.0
        %v2611 = vmax.f32 %v2595, 0.0
        %v2612 = vmax.f32 %v2596, 0.0
        %v2613 = vmax.f32 %v2597, 0.0
        %v2614 = vmax.f32 %v2598, 0.0
        %v2615 = vmax.f32 %v2599, 0.0
        %v2616 = vmax.f32 %v2600, 0.0
        %v2617 = vmax.f32 %v2601, 0.0
        %v2618 = vmax.f32 %v2602, 0.0
        %v2619 = vmax.f32 %v2603, 0.0
        %v2620 = vmax.f32 %v2604, 0.0
        %v2621 = vmax.f32 %v2605, 0.0
        %v2622 = vmax.f32 %v2606, 0.0
        %v2623 = vmax.f32 %v2607, 0.0
        %v2624 = vmax.f32 %v2608, 0.0
        %v2625 = vld [vmem:[%s4] sm:$0xff]
        %v2626 = vld [vmem:[%s4 + $0x8] sm:$0xff]
        %v2627 = vld [vmem:[%s4 + $0x10] sm:$0xff]
        %v2628 = vld [vmem:[%s4 + $0x18] sm:$0xff]
        %v2629 = vld [vmem:[%s4 + $0x20] sm:$0xff]
        %v2630 = vld [vmem:[%s4 + $0x28] sm:$0xff]
        %v2631 = vld [vmem:[%s4 + $0x30] sm:$0xff]
        %v2632 = vld [vmem:[%s4 + $0x38] sm:$0xff]
        %v2633 = vld [vmem:[%s4 + $0x40] sm:$0xff]
        %v2634 = vld [vmem:[%s4 + $0x48] sm:$0xff]
        %v2635 = vld [vmem:[%s4 + $0x50] sm:$0xff]
        %v2636 = vld [vmem:[%s4 + $0x58] sm:$0xff]
        %v2637 = vld [vmem:[%s4 + $0x60] sm:$0xff]
        %v2638 = vld [vmem:[%s4 + $0x68] sm:$0xff]
        %v2639 = vld [vmem:[%s4 + $0x70] sm:$0xff]
        %v2640 = vld [vmem:[%s4 + $0x78] sm:$0xff]
        %v2641 = vmul.f32 %v2609, %v2625
        %v2642 = vmul.f32 %v2610, %v2626
        %v2643 = vmul.f32 %v2611, %v2627
        %v2644 = vmul.f32 %v2612, %v2628
        %v2645 = vmul.f32 %v2613, %v2629
        %v2646 = vmul.f32 %v2614, %v2630
        %v2647 = vmul.f32 %v2615, %v2631
        %v2648 = vmul.f32 %v2616, %v2632
        %v2649 = vmul.f32 %v2617, %v2633
        %v2650 = vmul.f32 %v2618, %v2634
        %v2651 = vmul.f32 %v2619, %v2635
        %v2652 = vmul.f32 %v2620, %v2636
        %v2653 = vmul.f32 %v2621, %v2637
        %v2654 = vmul.f32 %v2622, %v2638
        %v2655 = vmul.f32 %v2623, %v2639
        %v2656 = vmul.f32 %v2624, %v2640
        %vm2657 = vcmask 195584
        %v2658 = vsel %vm2657, %v2641, -inf
        %v2659 = vsel %vm2657, %v2642, -inf
        %v2660 = vmax.f32 %v2658, %v2659
        %v2661 = vrot.slane %v2660, 4
        %v2662 = vmax.f32 %v2660, %v2661
        %v2663 = vrot.slane %v2662, 2
        %v2664 = vmax.f32 %v2662, %v2663
        %v2665 = vrot.slane %v2664, 1
        %v2666 = vmax.f32 %v2664, %v2665
        %v2667 = vsel %vm2657, %v2643, -inf
        %v2668 = vsel %vm2657, %v2644, -inf
        %v2669 = vmax.f32 %v2667, %v2668
        %v2670 = vrot.slane %v2669, 4
        %v2671 = vmax.f32 %v2669, %v2670
        %v2672 = vrot.slane %v2671, 2
        %v2673 = vmax.f32 %v2671, %v2672
        %v2674 = vrot.slane %v2673, 1
        %v2675 = vmax.f32 %v2673, %v2674
        %v2676 = vsel %vm2657, %v2645, -inf
        %v2677 = vsel %vm2657, %v2646, -inf
        %v2678 = vmax.f32 %v2676, %v2677
        %v2679 = vrot.slane %v2678, 4
        %v2680 = vmax.f32 %v2678, %v2679
        %v2681 = vrot.slane %v2680, 2
        %v2682 = vmax.f32 %v2680, %v2681
        %v2683 = vrot.slane %v2682, 1
        %v2684 = vmax.f32 %v2682, %v2683
        %v2685 = vsel %vm2657, %v2647, -inf
        %v2686 = vsel %vm2657, %v2648, -inf
        %v2687 = vmax.f32 %v2685, %v2686
        %v2688 = vrot.slane %v2687, 4
        %v2689 = vmax.f32 %v2687, %v2688
        %v2690 = vrot.slane %v2689, 2
        %v2691 = vmax.f32 %v2689, %v2690
        %v2692 = vrot.slane %v2691, 1
        %v2693 = vmax.f32 %v2691, %v2692
        %v2694 = vsel %vm2657, %v2649, -inf
        %v2695 = vsel %vm2657, %v2650, -inf
        %v2696 = vmax.f32 %v2694, %v2695
        %v2697 = vrot.slane %v2696, 4
        %v2698 = vmax.f32 %v2696, %v2697
        %v2699 = vrot.slane %v2698, 2
        %v2700 = vmax.f32 %v2698, %v2699
        %v2701 = vrot.slane %v2700, 1
        %v2702 = vmax.f32 %v2700, %v2701
        %v2703 = vsel %vm2657, %v2651, -inf
        %v2704 = vsel %vm2657, %v2652, -inf
        %v2705 = vmax.f32 %v2703, %v2704
        %v2706 = vrot.slane %v2705, 4
        %v2707 = vmax.f32 %v2705, %v2706
        %v2708 = vrot.slane %v2707, 2
        %v2709 = vmax.f32 %v2707, %v2708
        %v2710 = vrot.slane %v2709, 1
        %v2711 = vmax.f32 %v2709, %v2710
        %v2712 = vsel %vm2657, %v2653, -inf
        %v2713 = vsel %vm2657, %v2654, -inf
        %v2714 = vmax.f32 %v2712, %v2713
        %v2715 = vrot.slane %v2714, 4
        %v2716 = vmax.f32 %v2714, %v2715
        %v2717 = vrot.slane %v2716, 2
        %v2718 = vmax.f32 %v2716, %v2717
        %v2719 = vrot.slane %v2718, 1
        %v2720 = vmax.f32 %v2718, %v2719
        %v2721 = vsel %vm2657, %v2655, -inf
        %v2722 = vsel %vm2657, %v2656, -inf
        %v2723 = vmax.f32 %v2721, %v2722
        %v2724 = vrot.slane %v2723, 4
        %v2725 = vmax.f32 %v2723, %v2724
        %v2726 = vrot.slane %v2725, 2
        %v2727 = vmax.f32 %v2725, %v2726
        %v2728 = vrot.slane %v2727, 1
        %v2729 = vmax.f32 %v2727, %v2728
        %v2730 = vld [vmem:[%s5] sm:$0xff]
        %v2731 = vld [vmem:[%s5 + $0x8] sm:$0xff]
        %v2732 = vld [vmem:[%s5 + $0x10] sm:$0xff]
        %v2733 = vld [vmem:[%s6] sm:$0x1]
        %v2735 = vlaneseq
        %v2736 = vshrl.u32 %v2735, 7
        %v2737 = vsub.s32 0, %v2736
        %v2738 = vrot.slane %v2733, %v2737
        %vm2748 = vcmask 1041409
        %v2749 = vsel %vm2748, %v2675, %v2666
        %vm2750 = vcmask 1042434
        %v2751 = vsel %vm2750, %v2684, %v2749
        %vm2752 = vcmask 1043459
        %v2753 = vsel %vm2752, %v2693, %v2751
        %vm2754 = vcmask 1044484
        %v2755 = vsel %vm2754, %v2702, %v2753
        %vm2756 = vcmask 1045509
        %v2757 = vsel %vm2756, %v2711, %v2755
        %vm2758 = vcmask 1046534
        %v2759 = vsel %vm2758, %v2720, %v2757
        %vm2760 = vcmask 1047559
        %v2761 = vsel %vm2760, %v2729, %v2759
        %v2762 = vsel %vm2657, %v2761, 0
        %2764 = vmatprep.subr.mxu0 0.0
        %2765 = vmatpush1.msra.mxu0 0.0
        %2766 = vmatprep.subr.mxu0 0.0
        %2767 = vmatpush1.msra.mxu0 0.0
        %2768 = vmatprep.subr.mxu0 0.0
        %2769 = vmatpush1.msra.mxu0 0.0
        %2770 = vmatprep.subr.mxu0 0.0
        %2771 = vmatpush1.msra.mxu0 0.0
        %2772 = vmatprep.subr.mxu0 0.0
        %2773 = vmatpush1.msra.mxu0 0.0
        %2774 = vmatprep.subr.mxu0 0.0
        %2775 = vmatpush1.msra.mxu0 0.0
        %2776 = vmatprep.subr.mxu0 0.0
        %2777 = vmatpush1.msra.mxu0 0.0
        %2778 = vmatprep.subr.mxu0 0.0
        %2779 = vmatpush1.msra.mxu0 0.0
        %2780 = vmatprep.subr.mxu0 0.0
        %2781 = vmatpush1.msra.mxu0 0.0
        %2782 = vmatprep.subr.mxu0 0.0
        %2783 = vmatpush1.msra.mxu0 0.0
        %2784 = vmatprep.subr.mxu0 0.0
        %2785 = vmatpush1.msra.mxu0 0.0
        %2786 = vmatprep.subr.mxu0 0.0
        %2787 = vmatpush1.msra.mxu0 0.0
        %2788 = vmatprep.subr.mxu0 0.0
        %2789 = vmatpush1.msra.mxu0 0.0
        %2790 = vmatprep.subr.mxu0 0.0
        %2791 = vmatpush1.msra.mxu0 %v2732
        %2792 = vmatprep.subr.mxu0 0.0
        %2793 = vmatpush1.msra.mxu0 %v2731
        %2794 = vmatprep.subr.mxu0 0.0
        %2795 = vmatpush1.msra.mxu0 %v2730
        %2796 = vmatprep.subr.mxu0 0.0
        %2797 = vmatpush2.msra.mxu0 0.0
        %2798 = vmatprep.subr.mxu0 0.0
        %2799 = vmatpush2.msra.mxu0 0.0
        %2800 = vmatprep.subr.mxu0 0.0
        %2801 = vmatpush2.msra.mxu0 0.0
        %2802 = vmatprep.subr.mxu0 0.0
        %2803 = vmatpush2.msra.mxu0 0.0
        %2804 = vmatprep.subr.mxu0 0.0
        %2805 = vmatpush2.msra.mxu0 0.0
        %2806 = vmatprep.subr.mxu0 0.0
        %2807 = vmatpush2.msra.mxu0 0.0
        %2808 = vmatprep.subr.mxu0 0.0
        %2809 = vmatpush2.msra.mxu0 0.0
        %2810 = vmatprep.subr.mxu0 0.0
        %2811 = vmatpush2.msra.mxu0 0.0
        %2812 = vmatprep.subr.mxu0 0.0
        %2813 = vmatpush2.msra.mxu0 0.0
        %2814 = vmatprep.subr.mxu0 0.0
        %2815 = vmatpush2.msra.mxu0 0.0
        %2816 = vmatprep.subr.mxu0 0.0
        %2817 = vmatpush2.msra.mxu0 0.0
        %2818 = vmatprep.subr.mxu0 0.0
        %2819 = vmatpush2.msra.mxu0 0.0
        %2820 = vmatprep.subr.mxu0 0.0
        %2821 = vmatpush2.msra.mxu0 0.0
        %2822 = vmatprep.subr.mxu0 0.0
        %2823 = vmatpush2.msra.mxu0 0.0
        %2824 = vmatprep.subr.mxu0 0.0
        %2825 = vmatpush2.msra.mxu0 0.0
        %2826 = vmatprep.subr.mxu0 0.0
        %2827 = vmatpush2.msra.mxu0 0.0
        %2828 = vmatprep.mubr.f32.mxu0 0.0
        %2829 = vmatmul.mubr.f32.gmra.mxu0 %v2762
        %v2830 = vpop.f32.mrf.mxu0
        %v2831 = vadd.f32 %v2738, %v2830
        %v2832 = vpop.f32.mrf.mxu0
        %2833 = vdwg.mxu0
        %2834 = vst [vmem:[%s271] sm:$0xff] %v2831
        %s2835 = sand.u32 %s181, 1
        %s2836 = scalar_lea.sflag [#allocation3], %s2835
        %s2837 = sand.u32 %s181, 1
        %s2838 = smul.addr %s2837, 8
        %s2839 = scalar_lea.vmem [#allocation2], %s2838
        // Predicated region
        $region49: #{tpu_custom_call.1} parent=47 // pred_check
          %p2840 = pneg %p191
        $region50: #{tpu_custom_call.1} parent=47 // pred_check_branch
          %2842 = sbr.rel (%p2840) target = $region52
        $region51: #{tpu_custom_call.1} parent=47 // pred_region
          %s2844 = ssub.s32 128, 128
          %2845 = vsyncadd %s2836, %s2844
          %s2846 = smul.addr %s21, 128
          %s2847 = scalar_lea.hbm %s7, %s2846
          %s2849 = sshll.u32 %s2839, 4
          %s2850 = int_to_ptr.vmem [resolvable:$true] %s2849
          %2852 = dma.vmem_to_hbm [thread:$0]  %s2850, 128, %s2847, %s2836
        $region52: #{tpu_custom_call.1} parent=47 // pred_fallthru
          _
      $region48: #{tpu_custom_call.1} parent=5 // pred_fallthru
        _
      %p2853 = scmp.le.s32.totalorder 2, %s16
      // Predicated region
      $region53: #{tpu_custom_call.1} parent=5 // pred_check
        %p2854 = pneg %p2853
      $region54: #{tpu_custom_call.1} parent=5 // pred_check_branch
        %2856 = sbr.rel (%p2854) target = $region56
      $region55: #{tpu_custom_call.1} parent=5 // pred_region
        %s2857 = ssub.s32 %s16, 2
        // Predicated region
        $region57: #{tpu_custom_call.1} parent=55 // pred_check
          %p2858 = pneg %p197
        $region58: #{tpu_custom_call.1} parent=55 // pred_check_branch
          %2860 = sbr.rel (%p2858) target = $region60
        $region59: #{tpu_custom_call.1} parent=55 // pred_region
          %s2861 = sand.u32 %s182, 1
          %s2862 = scalar_lea.sflag [#allocation3], %s2861
          %s2863 = sand.u32 %s182, 1
          %s2864 = smul.addr %s2863, 8
          %s2865 = scalar_lea.vmem [#allocation2], %s2864
          %2866 = dma.done %s2862, 128
        $region60: #{tpu_custom_call.1} parent=55 // pred_fallthru
          _
      $region56: #{tpu_custom_call.1} parent=5 // pred_fallthru
        _
    $region6: #{tpu_custom_call.1} parent=1 // loop_footer
      %s20 = sadd.s32 1, %s16
    $region7: #{tpu_custom_call.1} parent=1 // loop_footer_branch
      %15 = sbr.rel target = $region3
    $region8: #{tpu_custom_call.1} parent=1 // loop_exit
      _
    %2867 = vsyncpa [#allocation3], 1
    %s2868 = scalar_lea.sflag [#allocation3], 1
    %2869 = vsyncpa %s2868, 1

</llo_original>
